<compile_context>
chip_gen: v7x
topology: tpu7x:2x2x1
jax: 0.10.0
libtpu: 0.0.40
codegen_flags: <defaults>
</compile_context>

<pallas_src>
import functools

import jax
import jax.numpy as jnp
from jax.experimental import pallas as pl
from jax.experimental.pallas import tpu as pltpu

# ---------------- synthetic "bert config" (small shapes) ----------------
VOCAB = 100
HIDDEN = 32
N_LAYERS = 2
N_HEADS = 2
HEAD_DIM = HIDDEN // N_HEADS
INTERMEDIATE = 64
MAX_POS = 16
TYPE_VOCAB = 2
NUM_LABELS = 5
LABELS_PAD = 128            # lane-dense classifier output width (sliced back to NUM_LABELS)
LN_EPS = 1e-12
ATTN_SCALE = 1.0 / (HEAD_DIM ** 0.5)


def _layernorm(x, g, b):
    mean = jnp.mean(x, axis=-1, keepdims=True)
    cen = x - mean
    var = jnp.mean(cen * cen, axis=-1, keepdims=True)
    return cen * jax.lax.rsqrt(var + LN_EPS) * g + b


# ---------------- the fused per-layer kernel (grid axis = layer) ----------------
def _bert_layer_kernel(
        emb_ref, maskb_ref,                        # (B*S, H) summed embeddings, (B, S) key bias
        eg_ref, eb_ref,                            # embedding layernorm gamma/beta (1, H)
        qkvw_ref, qkvb_ref,                        # (H, 3H) bf16, (1, 3H) f32   packed QKV (scale folded into Q)
        aow_ref, aob_ref,                          # (H, H) bf16, (1, H) f32     attn output proj
        ln1g_ref, ln1b_ref,                        # (1, H)
        fiw_ref, fib_ref,                          # (H, I) bf16, (1, I)
        fow_ref, fob_ref,                          # (I, H) bf16, (1, H)
        ln2g_ref, ln2b_ref,                        # (1, H)
        poolw_ref, poolb_ref,                      # (H, H) bf16, (1, H)
        clsw_ref, clsb_ref,                        # (H, LABELS_PAD) bf16, (1, LABELS_PAD)
        logits_ref,                                # out: (B, LABELS_PAD)
        h_ref,                                     # VMEM scratch: (B*S, H) f32, carried across layers
        *, B, S):
    li = pl.program_id(0)

    # embeddings -> layernorm, only on the first grid step
    @pl.when(li == 0)
    def _():
        h_ref[...] = _layernorm(emb_ref[...], eg_ref[...], eb_ref[...])

    h = h_ref[...]                                                   # (B*S, H) f32

    # ---- fused QKV projection (bf16 MXU; attention scale pre-folded into Q) ----
    qkv = jnp.dot(h.astype(jnp.bfloat16), qkvw_ref[...],
                  preferred_element_type=jnp.float32) + qkvb_ref[...]

    # split heads into a merged (NH*B) batch axis by row-concatenating head column slices
    def split_heads(col0):
        parts = [qkv[:, col0 + hd * HEAD_DIM: col0 + (hd + 1) * HEAD_DIM]
                 for hd in range(N_HEADS)]
        return jnp.concatenate(parts, axis=0).reshape(N_HEADS * B, S, HEAD_DIM)

    q3 = split_heads(0).astype(jnp.bfloat16)
    k3 = split_heads(HIDDEN).astype(jnp.bfloat16)
    v3 = split_heads(2 * HIDDEN).astype(jnp.bfloat16)

    # additive key bias, replicated over heads once per layer (no per-head re-broadcast)
    bias3 = jnp.concatenate([maskb_ref[...]] * N_HEADS, axis=0)[:, None, :]   # (NH*B, 1, S)

    # ---- batched attention: one scores matmul + one ctx matmul for all batch*head ----
    scores = jnp.einsum('bqd,bkd->bqk', q3, k3,
                        preferred_element_type=jnp.float32) + bias3           # (NH*B, S, S)
    p = jnp.exp(scores - jnp.max(scores, axis=-1, keepdims=True))
    p = p * pl.reciprocal(jnp.sum(p, axis=-1, keepdims=True), approx=True)
    ctx = jnp.einsum('bqk,bkd->bqd', p.astype(jnp.bfloat16), v3,
                     preferred_element_type=jnp.float32)                      # (NH*B, S, HD)

    # merge heads along the lane dim (in registers; no VMEM scratch round-trip)
    ctx2 = ctx.reshape(N_HEADS, B * S, HEAD_DIM)
    ctx_flat = jnp.concatenate([ctx2[hd] for hd in range(N_HEADS)], axis=-1)  # (B*S, H)

    attn = jnp.dot(ctx_flat.astype(jnp.bfloat16), aow_ref[...],
                   preferred_element_type=jnp.float32) + aob_ref[...]
    h = _layernorm(attn + h, ln1g_ref[...], ln1b_ref[...])

    # ---- feed-forward ----
    ffn = jnp.dot(h.astype(jnp.bfloat16), fiw_ref[...],
                  preferred_element_type=jnp.float32) + fib_ref[...]
    # TODO(synk): HF BERT default is exact (erf) GELU; tanh approximation differs ~1e-3.
    ffn = jax.nn.gelu(ffn, approximate=True)
    ffn_out = jnp.dot(ffn.astype(jnp.bfloat16), fow_ref[...],
                      preferred_element_type=jnp.float32) + fob_ref[...]
    h = _layernorm(ffn_out + h, ln2g_ref[...], ln2b_ref[...])
    h_ref[...] = h

    # ---- pooler + classifier on CLS rows only, on the last grid step ----
    @pl.when(li == N_LAYERS - 1)
    def _():
        # Dropout(0.3) is an identity at inference.
        cls_h = jnp.concatenate([h[b * S:b * S + 1, :] for b in range(B)], axis=0)   # (B, H)
        pooled = jnp.tanh(jnp.dot(cls_h.astype(jnp.bfloat16), poolw_ref[...],
                                  preferred_element_type=jnp.float32) + poolb_ref[...])
        logits = jnp.dot(pooled.astype(jnp.bfloat16), clsw_ref[...],
                         preferred_element_type=jnp.float32) + clsb_ref[...]
        logits_ref[...] = logits.astype(logits_ref.dtype)


# ---------------- parameter init (deterministic, synthetic) ----------------
def init_params(key):
    def normal(key, shape):
        return (0.02 * jax.random.normal(key, shape)).astype(jnp.float32)

    keys = jax.random.split(key, 8 + N_LAYERS)
    params = {
        "word_emb": normal(keys[0], (VOCAB, HIDDEN)),
        "pos_emb": normal(keys[1], (MAX_POS, HIDDEN)),
        "type_emb": normal(keys[2], (TYPE_VOCAB, HIDDEN)),
        "emb_ln_g": jnp.ones((HIDDEN,), jnp.float32),
        "emb_ln_b": jnp.zeros((HIDDEN,), jnp.float32),
        "pool_w": normal(keys[3], (HIDDEN, HIDDEN)),
        "pool_b": jnp.zeros((HIDDEN,), jnp.float32),
        "cls_w": normal(keys[4], (HIDDEN, NUM_LABELS)),
        "cls_b": jnp.zeros((NUM_LABELS,), jnp.float32),
        "layers": [],
    }
    for li in range(N_LAYERS):
        lk = jax.random.split(keys[8 + li], 6)
        params["layers"].append({
            "q_w": normal(lk[0], (HIDDEN, HIDDEN)), "q_b": jnp.zeros((HIDDEN,), jnp.float32),
            "k_w": normal(lk[1], (HIDDEN, HIDDEN)), "k_b": jnp.zeros((HIDDEN,), jnp.float32),
            "v_w": normal(lk[2], (HIDDEN, HIDDEN)), "v_b": jnp.zeros((HIDDEN,), jnp.float32),
            "ao_w": normal(lk[3], (HIDDEN, HIDDEN)), "ao_b": jnp.zeros((HIDDEN,), jnp.float32),
            "ln1_g": jnp.ones((HIDDEN,), jnp.float32), "ln1_b": jnp.zeros((HIDDEN,), jnp.float32),
            "fi_w": normal(lk[4], (HIDDEN, INTERMEDIATE)), "fi_b": jnp.zeros((INTERMEDIATE,), jnp.float32),
            "fo_w": normal(lk[5], (INTERMEDIATE, HIDDEN)), "fo_b": jnp.zeros((HIDDEN,), jnp.float32),
            "ln2_g": jnp.ones((HIDDEN,), jnp.float32), "ln2_b": jnp.zeros((HIDDEN,), jnp.float32),
        })
    return params


def _pack_layer_params(layers):
    """Stack per-layer params with a leading layer axis.  Weights -> bf16 (MXU-native,
    halves the streamed DMA); biases / LN params stay f32.  The 1/sqrt(HEAD_DIM)
    attention scale is folded into the Q weight columns and Q bias (free, host-side)."""
    def stack(fn, dtype=jnp.float32):
        return jnp.stack([fn(L) for L in layers]).astype(dtype)
    return (
        stack(lambda L: jnp.concatenate(
            [L["q_w"] * ATTN_SCALE, L["k_w"], L["v_w"]], axis=1), jnp.bfloat16),        # (L, H, 3H)
        stack(lambda L: jnp.concatenate(
            [L["q_b"] * ATTN_SCALE, L["k_b"], L["v_b"]])[None, :]),                     # (L, 1, 3H)
        stack(lambda L: L["ao_w"], jnp.bfloat16),                                       # (L, H, H)
        stack(lambda L: L["ao_b"][None, :]),                                            # (L, 1, H)
        stack(lambda L: L["ln1_g"][None, :]),
        stack(lambda L: L["ln1_b"][None, :]),
        stack(lambda L: L["fi_w"], jnp.bfloat16),                                       # (L, H, I)
        stack(lambda L: L["fi_b"][None, :]),
        stack(lambda L: L["fo_w"], jnp.bfloat16),                                       # (L, I, H)
        stack(lambda L: L["fo_b"][None, :]),
        stack(lambda L: L["ln2_g"][None, :]),
        stack(lambda L: L["ln2_b"][None, :]),
    )


# ---------------- forward pass ----------------
def bert_multilabel_forward(params, input_ids, attention_mask, token_type_ids=None):
    B, S = input_ids.shape
    if token_type_ids is None:
        token_type_ids = jnp.zeros_like(input_ids)

    # embeddings (gathers are plain-JAX glue; sum + layernorm happen inside the kernel)
    word = params["word_emb"][input_ids]                        # (B, S, H)
    pos = params["pos_emb"][jnp.arange(S)][None, :, :]          # (1, S, H)
    tok = params["type_emb"][token_type_ids]                    # (B, S, H)
    emb = (word + pos + tok).reshape(B * S, HIDDEN).astype(jnp.float32)

    # additive key-mask bias kept at (B, S); broadcast over heads/queries in-kernel
    mask_bias = (1.0 - attention_mask.astype(jnp.float32)) * -10000.0

    layer_args = _pack_layer_params(params["layers"])

    # classifier weights zero-padded to a lane-dense 128-wide output, sliced back below
    cls_w = jnp.zeros((HIDDEN, LABELS_PAD), jnp.float32).at[:, :NUM_LABELS].set(
        params["cls_w"]).astype(jnp.bfloat16)
    cls_b = jnp.zeros((1, LABELS_PAD), jnp.float32).at[0, :NUM_LABELS].set(params["cls_b"])
    pool_w = params["pool_w"].astype(jnp.bfloat16)
    pool_b = params["pool_b"].reshape(1, HIDDEN)

    const2 = lambda l: (0, 0)          # resident blocks (fetched once; index constant in l)
    layer3 = lambda l: (l, 0, 0)       # streamed per-layer blocks (double-buffered by Pallas)

    in_specs = [
        pl.BlockSpec((B * S, HIDDEN), const2),                 # emb
        pl.BlockSpec((B, S), const2),                          # mask bias
        pl.BlockSpec((1, HIDDEN), const2),                     # emb_ln_g
        pl.BlockSpec((1, HIDDEN), const2),                     # emb_ln_b
        pl.BlockSpec((None, HIDDEN, 3 * HIDDEN), layer3),      # qkvw
        pl.BlockSpec((None, 1, 3 * HIDDEN), layer3),           # qkvb
        pl.BlockSpec((None, HIDDEN, HIDDEN), layer3),          # aow
        pl.BlockSpec((None, 1, HIDDEN), layer3),               # aob
        pl.BlockSpec((None, 1, HIDDEN), layer3),               # ln1g
        pl.BlockSpec((None, 1, HIDDEN), layer3),               # ln1b
        pl.BlockSpec((None, HIDDEN, INTERMEDIATE), layer3),    # fiw
        pl.BlockSpec((None, 1, INTERMEDIATE), layer3),         # fib
        pl.BlockSpec((None, INTERMEDIATE, HIDDEN), layer3),    # fow
        pl.BlockSpec((None, 1, HIDDEN), layer3),               # fob
        pl.BlockSpec((None, 1, HIDDEN), layer3),               # ln2g
        pl.BlockSpec((None, 1, HIDDEN), layer3),               # ln2b
        pl.BlockSpec((HIDDEN, HIDDEN), const2),                # pool_w
        pl.BlockSpec((1, HIDDEN), const2),                     # pool_b
        pl.BlockSpec((HIDDEN, LABELS_PAD), const2),            # cls_w
        pl.BlockSpec((1, LABELS_PAD), const2),                 # cls_b
    ]

    logits_full = pl.pallas_call(
        functools.partial(_bert_layer_kernel, B=B, S=S),
        out_shape=jax.ShapeDtypeStruct((B, LABELS_PAD), jnp.float32),
        grid=(N_LAYERS,),
        in_specs=in_specs,
        out_specs=pl.BlockSpec((B, LABELS_PAD), const2),
        scratch_shapes=[pltpu.VMEM((B * S, HIDDEN), jnp.float32)],   # carried activation h
        compiler_params=pltpu.CompilerParams(dimension_semantics=("arbitrary",)),
    )(
        emb, mask_bias,
        params["emb_ln_g"].reshape(1, HIDDEN), params["emb_ln_b"].reshape(1, HIDDEN),
        *layer_args,
        pool_w, pool_b,
        cls_w, cls_b,
    )

    # real label lanes only
    return logits_full[:, :NUM_LABELS]


if __name__ == "__main__":
    key = jax.random.PRNGKey(0)
    pkey, ikey = jax.random.split(key)

    params = init_params(pkey)

    B, S = 2, 8
    input_ids = jax.random.randint(ikey, (B, S), 0, VOCAB, dtype=jnp.int32)
    attention_mask = jnp.array([[1, 1, 1, 1, 1, 1, 1, 1],
                                [1, 1, 1, 1, 1, 0, 0, 0]], dtype=jnp.int32)
    token_type_ids = jnp.zeros((B, S), dtype=jnp.int32)

    forward = jax.jit(bert_multilabel_forward)
    logits = forward(params, input_ids, attention_mask, token_type_ids)
    logits = jax.block_until_ready(logits)
    assert logits.shape == (B, NUM_LABELS)
    print("KERNEL_OK")
</pallas_src>

<mosaic_0001>
module attributes {stable_mosaic.version = 11 : i64} {
  func.func @_bert_layer_kernel(%arg0: i32, %arg1: memref<16x32xf32, #tpu.memory_space<vmem>>, %arg2: memref<2x8xf32, #tpu.memory_space<vmem>>, %arg3: memref<1x32xf32, #tpu.memory_space<vmem>>, %arg4: memref<1x32xf32, #tpu.memory_space<vmem>>, %arg5: memref<1x32x96xbf16, #tpu.memory_space<vmem>>, %arg6: memref<1x1x96xf32, #tpu.memory_space<vmem>>, %arg7: memref<1x32x32xbf16, #tpu.memory_space<vmem>>, %arg8: memref<1x1x32xf32, #tpu.memory_space<vmem>>, %arg9: memref<1x1x32xf32, #tpu.memory_space<vmem>>, %arg10: memref<1x1x32xf32, #tpu.memory_space<vmem>>, %arg11: memref<1x32x64xbf16, #tpu.memory_space<vmem>>, %arg12: memref<1x1x64xf32, #tpu.memory_space<vmem>>, %arg13: memref<1x64x32xbf16, #tpu.memory_space<vmem>>, %arg14: memref<1x1x32xf32, #tpu.memory_space<vmem>>, %arg15: memref<1x1x32xf32, #tpu.memory_space<vmem>>, %arg16: memref<1x1x32xf32, #tpu.memory_space<vmem>>, %arg17: memref<32x32xbf16, #tpu.memory_space<vmem>>, %arg18: memref<1x32xf32, #tpu.memory_space<vmem>>, %arg19: memref<32x128xbf16, #tpu.memory_space<vmem>>, %arg20: memref<1x128xf32, #tpu.memory_space<vmem>>, %arg21: memref<2x128xf32, #tpu.memory_space<vmem>>, %arg22: memref<16x32xf32, #tpu.memory_space<vmem>>) attributes {dimension_semantics = [#tpu.dimension_semantics<arbitrary>], iteration_bounds = array<i64: 2>, scalar_prefetch = 0 : i64, scratch_operands = 1 : i64, tpu.core_type = #tpu.core_type<tc>, window_params = [{pipeline_mode = #tpu.pipeline_mode<synchronous>, transform_indices = @transform_0, window_bounds = array<i64: 16, 32>}, {pipeline_mode = #tpu.pipeline_mode<synchronous>, transform_indices = @transform_1, window_bounds = array<i64: 2, 8>}, {pipeline_mode = #tpu.pipeline_mode<synchronous>, transform_indices = @transform_2, window_bounds = array<i64: 1, 32>}, {pipeline_mode = #tpu.pipeline_mode<synchronous>, transform_indices = @transform_3, window_bounds = array<i64: 1, 32>}, {transform_indices = @transform_4, window_bounds = array<i64: 1, 32, 96>}, {transform_indices = @transform_5, window_bounds = array<i64: 1, 1, 96>}, {transform_indices = @transform_6, window_bounds = array<i64: 1, 32, 32>}, {transform_indices = @transform_7, window_bounds = array<i64: 1, 1, 32>}, {transform_indices = @transform_8, window_bounds = array<i64: 1, 1, 32>}, {transform_indices = @transform_9, window_bounds = array<i64: 1, 1, 32>}, {transform_indices = @transform_10, window_bounds = array<i64: 1, 32, 64>}, {transform_indices = @transform_11, window_bounds = array<i64: 1, 1, 64>}, {transform_indices = @transform_12, window_bounds = array<i64: 1, 64, 32>}, {transform_indices = @transform_13, window_bounds = array<i64: 1, 1, 32>}, {transform_indices = @transform_14, window_bounds = array<i64: 1, 1, 32>}, {transform_indices = @transform_15, window_bounds = array<i64: 1, 1, 32>}, {pipeline_mode = #tpu.pipeline_mode<synchronous>, transform_indices = @transform_16, window_bounds = array<i64: 32, 32>}, {pipeline_mode = #tpu.pipeline_mode<synchronous>, transform_indices = @transform_17, window_bounds = array<i64: 1, 32>}, {pipeline_mode = #tpu.pipeline_mode<synchronous>, transform_indices = @transform_18, window_bounds = array<i64: 32, 128>}, {pipeline_mode = #tpu.pipeline_mode<synchronous>, transform_indices = @transform_19, window_bounds = array<i64: 1, 128>}, {pipeline_mode = #tpu.pipeline_mode<synchronous>, transform_indices = @transform_20, window_bounds = array<i64: 2, 128>}]} {
    %c0_i32 = arith.constant 0 : i32
    %0 = arith.cmpi eq, %arg0, %c0_i32 : i32
    %1 = arith.extui %0 : i1 to i32
    %c0_i32_0 = arith.constant 0 : i32
    %2 = arith.cmpi ne, %1, %c0_i32_0 : i32
    scf.if %2 {
      %c0_64 = arith.constant 0 : index
      %c0_65 = arith.constant 0 : index
      %142 = vector.load %arg1[%c0_64, %c0_65] : memref<16x32xf32, #tpu.memory_space<vmem>>, vector<16x32xf32>
      %c0_66 = arith.constant 0 : index
      %c0_67 = arith.constant 0 : index
      %143 = vector.load %arg3[%c0_66, %c0_67] : memref<1x32xf32, #tpu.memory_space<vmem>>, vector<1x32xf32>
      %c0_68 = arith.constant 0 : index
      %c0_69 = arith.constant 0 : index
      %144 = vector.load %arg4[%c0_68, %c0_69] : memref<1x32xf32, #tpu.memory_space<vmem>>, vector<1x32xf32>
      %cst_70 = arith.constant dense<0.000000e+00> : vector<16xf32>
      %145 = vector.multi_reduction <add>, %142, %cst_70 [1] : vector<16x32xf32> to vector<16xf32>
      %146 = vector.shape_cast %145 : vector<16xf32> to vector<16x1xf32>
      %cst_71 = arith.constant 3.200000e+01 : f32
      %147 = vector.broadcast %cst_71 : f32 to vector<16x1xf32>
      %148 = arith.divf %146, %147 : vector<16x1xf32>
      %149 = vector.broadcast %148 : vector<16x1xf32> to vector<16x32xf32>
      %150 = arith.subf %142, %149 : vector<16x32xf32>
      %151 = arith.mulf %150, %150 : vector<16x32xf32>
      %cst_72 = arith.constant dense<0.000000e+00> : vector<16xf32>
      %152 = vector.multi_reduction <add>, %151, %cst_72 [1] : vector<16x32xf32> to vector<16xf32>
      %153 = vector.shape_cast %152 : vector<16xf32> to vector<16x1xf32>
      %cst_73 = arith.constant 3.200000e+01 : f32
      %154 = vector.broadcast %cst_73 : f32 to vector<16x1xf32>
      %155 = arith.divf %153, %154 : vector<16x1xf32>
      %cst_74 = arith.constant 9.99999996E-13 : f32
      %156 = vector.broadcast %cst_74 : f32 to vector<16x1xf32>
      %157 = arith.addf %155, %156 : vector<16x1xf32>
      %158 = math.rsqrt %157 : vector<16x1xf32>
      %159 = vector.broadcast %158 : vector<16x1xf32> to vector<16x32xf32>
      %160 = arith.mulf %150, %159 : vector<16x32xf32>
      %161 = vector.broadcast %143 : vector<1x32xf32> to vector<16x32xf32>
      %162 = arith.mulf %160, %161 : vector<16x32xf32>
      %163 = vector.broadcast %144 : vector<1x32xf32> to vector<16x32xf32>
      %164 = arith.addf %162, %163 : vector<16x32xf32>
      %c0_75 = arith.constant 0 : index
      %c0_76 = arith.constant 0 : index
      %165 = vector.load %arg22[%c0_75, %c0_76] : memref<16x32xf32, #tpu.memory_space<vmem>>, vector<16x32xf32>
      tpu.vector_store %arg22[%c0_75, %c0_76], %164 {strides = array<i32>} : memref<16x32xf32, #tpu.memory_space<vmem>>, vector<16x32xf32>,
    } else {
    }
    %c0 = arith.constant 0 : index
    %c0_1 = arith.constant 0 : index
    %3 = vector.load %arg22[%c0, %c0_1] : memref<16x32xf32, #tpu.memory_space<vmem>>, vector<16x32xf32>
    %4 = arith.truncf %3 : vector<16x32xf32> to vector<16x32xbf16>
    %c0_2 = arith.constant 0 : index
    %c0_3 = arith.constant 0 : index
    %c0_4 = arith.constant 0 : index
    %5 = vector.load %arg5[%c0_2, %c0_3, %c0_4] : memref<1x32x96xbf16, #tpu.memory_space<vmem>>, vector<1x32x96xbf16>
    %6 = vector.shape_cast %5 : vector<1x32x96xbf16> to vector<32x96xbf16>
    %cst = arith.constant dense<0.000000e+00> : vector<16x96xf32>
    %7 = tpu.matmul %4, %6, %cst {dimension_numbers = #tpu.dot_dimension_numbers<[1], [0], [0], [1], [0, 0, 1, 1], [], []>} : vector<16x32xbf16>, vector<32x96xbf16>, vector<16x96xf32> -> vector<16x96xf32>
    %c0_5 = arith.constant 0 : index
    %c0_6 = arith.constant 0 : index
    %c0_7 = arith.constant 0 : index
    %8 = vector.load %arg6[%c0_5, %c0_6, %c0_7] : memref<1x1x96xf32, #tpu.memory_space<vmem>>, vector<1x1x96xf32>
    %9 = vector.shape_cast %8 : vector<1x1x96xf32> to vector<1x96xf32>
    %10 = vector.broadcast %9 : vector<1x96xf32> to vector<16x96xf32>
    %11 = arith.addf %7, %10 : vector<16x96xf32>
    %12 = vector.extract_strided_slice %11 {offsets = [0, 0], sizes = [16, 16], strides = [1, 1]} : vector<16x96xf32> to vector<16x16xf32>
    %13 = vector.extract_strided_slice %11 {offsets = [0, 16], sizes = [16, 16], strides = [1, 1]} : vector<16x96xf32> to vector<16x16xf32>
    %14 = tpu.concatenate %12, %13 in 0 : vector<16x16xf32>, vector<16x16xf32> -> vector<32x16xf32>
    %15 = vector.shape_cast %14 : vector<32x16xf32> to vector<4x8x16xf32>
    %16 = arith.truncf %15 : vector<4x8x16xf32> to vector<4x8x16xbf16>
    %17 = vector.extract_strided_slice %11 {offsets = [0, 32], sizes = [16, 16], strides = [1, 1]} : vector<16x96xf32> to vector<16x16xf32>
    %18 = vector.extract_strided_slice %11 {offsets = [0, 48], sizes = [16, 16], strides = [1, 1]} : vector<16x96xf32> to vector<16x16xf32>
    %19 = tpu.concatenate %17, %18 in 0 : vector<16x16xf32>, vector<16x16xf32> -> vector<32x16xf32>
    %20 = vector.shape_cast %19 : vector<32x16xf32> to vector<4x8x16xf32>
    %21 = arith.truncf %20 : vector<4x8x16xf32> to vector<4x8x16xbf16>
    %22 = vector.extract_strided_slice %11 {offsets = [0, 64], sizes = [16, 16], strides = [1, 1]} : vector<16x96xf32> to vector<16x16xf32>
    %23 = vector.extract_strided_slice %11 {offsets = [0, 80], sizes = [16, 16], strides = [1, 1]} : vector<16x96xf32> to vector<16x16xf32>
    %24 = tpu.concatenate %22, %23 in 0 : vector<16x16xf32>, vector<16x16xf32> -> vector<32x16xf32>
    %25 = vector.shape_cast %24 : vector<32x16xf32> to vector<4x8x16xf32>
    %26 = arith.truncf %25 : vector<4x8x16xf32> to vector<4x8x16xbf16>
    %c0_8 = arith.constant 0 : index
    %c0_9 = arith.constant 0 : index
    %27 = vector.load %arg2[%c0_8, %c0_9] : memref<2x8xf32, #tpu.memory_space<vmem>>, vector<2x8xf32>
    %28 = tpu.concatenate %27, %27 in 0 : vector<2x8xf32>, vector<2x8xf32> -> vector<4x8xf32>
    %29 = vector.shape_cast %28 : vector<4x8xf32> to vector<4x1x8xf32>
    "tpu.trace_start"() <{level = 10 : i32, message = "bqd,bkd->bqk"}> : () -> ()
    %cst_10 = arith.constant dense<0.000000e+00> : vector<4x8x8xf32>
    %30 = tpu.matmul %16, %21, %cst_10 {dimension_numbers = #tpu.dot_dimension_numbers<[2], [2], [1], [1], [0, 0, 0, 1, 1, 1], [0], [0]>} : vector<4x8x16xbf16>, vector<4x8x16xbf16>, vector<4x8x8xf32> -> vector<4x8x8xf32>
    "tpu.trace_stop"() : () -> ()
    %31 = vector.broadcast %29 : vector<4x1x8xf32> to vector<4x8x8xf32>
    %32 = arith.addf %30, %31 : vector<4x8x8xf32>
    %cst_11 = arith.constant dense<0xFF800000> : vector<4x8xf32>
    %33 = vector.multi_reduction <maximumf>, %32, %cst_11 [2] : vector<4x8x8xf32> to vector<4x8xf32>
    %34 = vector.shape_cast %33 : vector<4x8xf32> to vector<4x8x1xf32>
    %35 = vector.broadcast %34 : vector<4x8x1xf32> to vector<4x8x8xf32>
    %36 = arith.subf %32, %35 : vector<4x8x8xf32>
    %37 = math.exp %36 : vector<4x8x8xf32>
    %cst_12 = arith.constant dense<0.000000e+00> : vector<4x8xf32>
    %38 = vector.multi_reduction <add>, %37, %cst_12 [2] : vector<4x8x8xf32> to vector<4x8xf32>
    %39 = vector.shape_cast %38 : vector<4x8xf32> to vector<4x8x1xf32>
    %40 = tpu.reciprocal %39 {approx = true} : vector<4x8x1xf32> -> vector<4x8x1xf32>
    %41 = vector.broadcast %40 : vector<4x8x1xf32> to vector<4x8x8xf32>
    %42 = arith.mulf %37, %41 : vector<4x8x8xf32>
    %43 = arith.truncf %42 : vector<4x8x8xf32> to vector<4x8x8xbf16>
    "tpu.trace_start"() <{level = 10 : i32, message = "bqk,bkd->bqd"}> : () -> ()
    %cst_13 = arith.constant dense<0.000000e+00> : vector<4x8x16xf32>
    %44 = tpu.matmul %43, %26, %cst_13 {dimension_numbers = #tpu.dot_dimension_numbers<[2], [1], [1], [2], [0, 0, 0, 1, 1, 2], [0], [0]>} : vector<4x8x8xbf16>, vector<4x8x16xbf16>, vector<4x8x16xf32> -> vector<4x8x16xf32>
    "tpu.trace_stop"() : () -> ()
    %45 = vector.shape_cast %44 : vector<4x8x16xf32> to vector<2x16x16xf32>
    %46 = vector.extract_strided_slice %45 {offsets = [0, 0, 0], sizes = [1, 16, 16], strides = [1, 1, 1]} : vector<2x16x16xf32> to vector<1x16x16xf32>
    %47 = vector.shape_cast %46 : vector<1x16x16xf32> to vector<16x16xf32>
    %48 = vector.extract_strided_slice %45 {offsets = [1, 0, 0], sizes = [1, 16, 16], strides = [1, 1, 1]} : vector<2x16x16xf32> to vector<1x16x16xf32>
    %49 = vector.shape_cast %48 : vector<1x16x16xf32> to vector<16x16xf32>
    %50 = tpu.concatenate %47, %49 in 1 : vector<16x16xf32>, vector<16x16xf32> -> vector<16x32xf32>
    %51 = arith.truncf %50 : vector<16x32xf32> to vector<16x32xbf16>
    %c0_14 = arith.constant 0 : index
    %c0_15 = arith.constant 0 : index
    %c0_16 = arith.constant 0 : index
    %52 = vector.load %arg7[%c0_14, %c0_15, %c0_16] : memref<1x32x32xbf16, #tpu.memory_space<vmem>>, vector<1x32x32xbf16>
    %53 = vector.shape_cast %52 : vector<1x32x32xbf16> to vector<32x32xbf16>
    %cst_17 = arith.constant dense<0.000000e+00> : vector<16x32xf32>
    %54 = tpu.matmul %51, %53, %cst_17 {dimension_numbers = #tpu.dot_dimension_numbers<[1], [0], [0], [1], [0, 0, 1, 1], [], []>} : vector<16x32xbf16>, vector<32x32xbf16>, vector<16x32xf32> -> vector<16x32xf32>
    %c0_18 = arith.constant 0 : index
    %c0_19 = arith.constant 0 : index
    %c0_20 = arith.constant 0 : index
    %55 = vector.load %arg8[%c0_18, %c0_19, %c0_20] : memref<1x1x32xf32, #tpu.memory_space<vmem>>, vector<1x1x32xf32>
    %56 = vector.shape_cast %55 : vector<1x1x32xf32> to vector<1x32xf32>
    %57 = vector.broadcast %56 : vector<1x32xf32> to vector<16x32xf32>
    %58 = arith.addf %54, %57 : vector<16x32xf32>
    %59 = arith.addf %58, %3 : vector<16x32xf32>
    %c0_21 = arith.constant 0 : index
    %c0_22 = arith.constant 0 : index
    %c0_23 = arith.constant 0 : index
    %60 = vector.load %arg9[%c0_21, %c0_22, %c0_23] : memref<1x1x32xf32, #tpu.memory_space<vmem>>, vector<1x1x32xf32>
    %61 = vector.shape_cast %60 : vector<1x1x32xf32> to vector<1x32xf32>
    %c0_24 = arith.constant 0 : index
    %c0_25 = arith.constant 0 : index
    %c0_26 = arith.constant 0 : index
    %62 = vector.load %arg10[%c0_24, %c0_25, %c0_26] : memref<1x1x32xf32, #tpu.memory_space<vmem>>, vector<1x1x32xf32>
    %63 = vector.shape_cast %62 : vector<1x1x32xf32> to vector<1x32xf32>
    %cst_27 = arith.constant dense<0.000000e+00> : vector<16xf32>
    %64 = vector.multi_reduction <add>, %59, %cst_27 [1] : vector<16x32xf32> to vector<16xf32>
    %65 = vector.shape_cast %64 : vector<16xf32> to vector<16x1xf32>
    %cst_28 = arith.constant 3.200000e+01 : f32
    %66 = vector.broadcast %cst_28 : f32 to vector<16x1xf32>
    %67 = arith.divf %65, %66 : vector<16x1xf32>
    %68 = vector.broadcast %67 : vector<16x1xf32> to vector<16x32xf32>
    %69 = arith.subf %59, %68 : vector<16x32xf32>
    %70 = arith.mulf %69, %69 : vector<16x32xf32>
    %cst_29 = arith.constant dense<0.000000e+00> : vector<16xf32>
    %71 = vector.multi_reduction <add>, %70, %cst_29 [1] : vector<16x32xf32> to vector<16xf32>
    %72 = vector.shape_cast %71 : vector<16xf32> to vector<16x1xf32>
    %cst_30 = arith.constant 3.200000e+01 : f32
    %73 = vector.broadcast %cst_30 : f32 to vector<16x1xf32>
    %74 = arith.divf %72, %73 : vector<16x1xf32>
    %cst_31 = arith.constant 9.99999996E-13 : f32
    %75 = vector.broadcast %cst_31 : f32 to vector<16x1xf32>
    %76 = arith.addf %74, %75 : vector<16x1xf32>
    %77 = math.rsqrt %76 : vector<16x1xf32>
    %78 = vector.broadcast %77 : vector<16x1xf32> to vector<16x32xf32>
    %79 = arith.mulf %69, %78 : vector<16x32xf32>
    %80 = vector.broadcast %61 : vector<1x32xf32> to vector<16x32xf32>
    %81 = arith.mulf %79, %80 : vector<16x32xf32>
    %82 = vector.broadcast %63 : vector<1x32xf32> to vector<16x32xf32>
    %83 = arith.addf %81, %82 : vector<16x32xf32>
    %84 = arith.truncf %83 : vector<16x32xf32> to vector<16x32xbf16>
    %c0_32 = arith.constant 0 : index
    %c0_33 = arith.constant 0 : index
    %c0_34 = arith.constant 0 : index
    %85 = vector.load %arg11[%c0_32, %c0_33, %c0_34] : memref<1x32x64xbf16, #tpu.memory_space<vmem>>, vector<1x32x64xbf16>
    %86 = vector.shape_cast %85 : vector<1x32x64xbf16> to vector<32x64xbf16>
    %cst_35 = arith.constant dense<0.000000e+00> : vector<16x64xf32>
    %87 = tpu.matmul %84, %86, %cst_35 {dimension_numbers = #tpu.dot_dimension_numbers<[1], [0], [0], [1], [0, 0, 1, 1], [], []>} : vector<16x32xbf16>, vector<32x64xbf16>, vector<16x64xf32> -> vector<16x64xf32>
    %c0_36 = arith.constant 0 : index
    %c0_37 = arith.constant 0 : index
    %c0_38 = arith.constant 0 : index
    %88 = vector.load %arg12[%c0_36, %c0_37, %c0_38] : memref<1x1x64xf32, #tpu.memory_space<vmem>>, vector<1x1x64xf32>
    %89 = vector.shape_cast %88 : vector<1x1x64xf32> to vector<1x64xf32>
    %90 = vector.broadcast %89 : vector<1x64xf32> to vector<16x64xf32>
    %91 = arith.addf %87, %90 : vector<16x64xf32>
    %92 = arith.mulf %91, %91 : vector<16x64xf32>
    %93 = arith.mulf %91, %92 : vector<16x64xf32>
    %cst_39 = arith.constant 4.471500e-02 : f32
    %94 = vector.broadcast %cst_39 : f32 to vector<16x64xf32>
    %95 = arith.mulf %94, %93 : vector<16x64xf32>
    %96 = arith.addf %91, %95 : vector<16x64xf32>
    %cst_40 = arith.constant 0.797884583 : f32
    %97 = vector.broadcast %cst_40 : f32 to vector<16x64xf32>
    %98 = arith.mulf %97, %96 : vector<16x64xf32>
    %99 = math.tanh %98 : vector<16x64xf32>
    %cst_41 = arith.constant 1.000000e+00 : f32
    %100 = vector.broadcast %cst_41 : f32 to vector<16x64xf32>
    %101 = arith.addf %100, %99 : vector<16x64xf32>
    %cst_42 = arith.constant 5.000000e-01 : f32
    %102 = vector.broadcast %cst_42 : f32 to vector<16x64xf32>
    %103 = arith.mulf %102, %101 : vector<16x64xf32>
    %104 = arith.mulf %91, %103 : vector<16x64xf32>
    %105 = arith.truncf %104 : vector<16x64xf32> to vector<16x64xbf16>
    %c0_43 = arith.constant 0 : index
    %c0_44 = arith.constant 0 : index
    %c0_45 = arith.constant 0 : index
    %106 = vector.load %arg13[%c0_43, %c0_44, %c0_45] : memref<1x64x32xbf16, #tpu.memory_space<vmem>>, vector<1x64x32xbf16>
    %107 = vector.shape_cast %106 : vector<1x64x32xbf16> to vector<64x32xbf16>
    %cst_46 = arith.constant dense<0.000000e+00> : vector<16x32xf32>
    %108 = tpu.matmul %105, %107, %cst_46 {dimension_numbers = #tpu.dot_dimension_numbers<[1], [0], [0], [1], [0, 0, 1, 1], [], []>} : vector<16x64xbf16>, vector<64x32xbf16>, vector<16x32xf32> -> vector<16x32xf32>
    %c0_47 = arith.constant 0 : index
    %c0_48 = arith.constant 0 : index
    %c0_49 = arith.constant 0 : index
    %109 = vector.load %arg14[%c0_47, %c0_48, %c0_49] : memref<1x1x32xf32, #tpu.memory_space<vmem>>, vector<1x1x32xf32>
    %110 = vector.shape_cast %109 : vector<1x1x32xf32> to vector<1x32xf32>
    %111 = vector.broadcast %110 : vector<1x32xf32> to vector<16x32xf32>
    %112 = arith.addf %108, %111 : vector<16x32xf32>
    %113 = arith.addf %112, %83 : vector<16x32xf32>
    %c0_50 = arith.constant 0 : index
    %c0_51 = arith.constant 0 : index
    %c0_52 = arith.constant 0 : index
    %114 = vector.load %arg15[%c0_50, %c0_51, %c0_52] : memref<1x1x32xf32, #tpu.memory_space<vmem>>, vector<1x1x32xf32>
    %115 = vector.shape_cast %114 : vector<1x1x32xf32> to vector<1x32xf32>
    %c0_53 = arith.constant 0 : index
    %c0_54 = arith.constant 0 : index
    %c0_55 = arith.constant 0 : index
    %116 = vector.load %arg16[%c0_53, %c0_54, %c0_55] : memref<1x1x32xf32, #tpu.memory_space<vmem>>, vector<1x1x32xf32>
    %117 = vector.shape_cast %116 : vector<1x1x32xf32> to vector<1x32xf32>
    %cst_56 = arith.constant dense<0.000000e+00> : vector<16xf32>
    %118 = vector.multi_reduction <add>, %113, %cst_56 [1] : vector<16x32xf32> to vector<16xf32>
    %119 = vector.shape_cast %118 : vector<16xf32> to vector<16x1xf32>
    %cst_57 = arith.constant 3.200000e+01 : f32
    %120 = vector.broadcast %cst_57 : f32 to vector<16x1xf32>
    %121 = arith.divf %119, %120 : vector<16x1xf32>
    %122 = vector.broadcast %121 : vector<16x1xf32> to vector<16x32xf32>
    %123 = arith.subf %113, %122 : vector<16x32xf32>
    %124 = arith.mulf %123, %123 : vector<16x32xf32>
    %cst_58 = arith.constant dense<0.000000e+00> : vector<16xf32>
    %125 = vector.multi_reduction <add>, %124, %cst_58 [1] : vector<16x32xf32> to vector<16xf32>
    %126 = vector.shape_cast %125 : vector<16xf32> to vector<16x1xf32>
    %cst_59 = arith.constant 3.200000e+01 : f32
    %127 = vector.broadcast %cst_59 : f32 to vector<16x1xf32>
    %128 = arith.divf %126, %127 : vector<16x1xf32>
    %cst_60 = arith.constant 9.99999996E-13 : f32
    %129 = vector.broadcast %cst_60 : f32 to vector<16x1xf32>
    %130 = arith.addf %128, %129 : vector<16x1xf32>
    %131 = math.rsqrt %130 : vector<16x1xf32>
    %132 = vector.broadcast %131 : vector<16x1xf32> to vector<16x32xf32>
    %133 = arith.mulf %123, %132 : vector<16x32xf32>
    %134 = vector.broadcast %115 : vector<1x32xf32> to vector<16x32xf32>
    %135 = arith.mulf %133, %134 : vector<16x32xf32>
    %136 = vector.broadcast %117 : vector<1x32xf32> to vector<16x32xf32>
    %137 = arith.addf %135, %136 : vector<16x32xf32>
    %c0_61 = arith.constant 0 : index
    %c0_62 = arith.constant 0 : index
    %138 = vector.load %arg22[%c0_61, %c0_62] : memref<16x32xf32, #tpu.memory_space<vmem>>, vector<16x32xf32>
    tpu.vector_store %arg22[%c0_61, %c0_62], %137 {strides = array<i32>} : memref<16x32xf32, #tpu.memory_space<vmem>>, vector<16x32xf32>,
    %c1_i32 = arith.constant 1 : i32
    %139 = arith.cmpi eq, %arg0, %c1_i32 : i32
    %140 = arith.extui %139 : i1 to i32
    %c0_i32_63 = arith.constant 0 : i32
    %141 = arith.cmpi ne, %140, %c0_i32_63 : i32
    scf.if %141 {
      %142 = vector.extract_strided_slice %137 {offsets = [0, 0], sizes = [1, 32], strides = [1, 1]} : vector<16x32xf32> to vector<1x32xf32>
      %143 = vector.extract_strided_slice %137 {offsets = [8, 0], sizes = [1, 32], strides = [1, 1]} : vector<16x32xf32> to vector<1x32xf32>
      %144 = tpu.concatenate %142, %143 in 0 : vector<1x32xf32>, vector<1x32xf32> -> vector<2x32xf32>
      %145 = arith.truncf %144 : vector<2x32xf32> to vector<2x32xbf16>
      %c0_64 = arith.constant 0 : index
      %c0_65 = arith.constant 0 : index
      %146 = vector.load %arg17[%c0_64, %c0_65] : memref<32x32xbf16, #tpu.memory_space<vmem>>, vector<32x32xbf16>
      %cst_66 = arith.constant dense<0.000000e+00> : vector<2x32xf32>
      %147 = tpu.matmul %145, %146, %cst_66 {dimension_numbers = #tpu.dot_dimension_numbers<[1], [0], [0], [1], [0, 0, 1, 1], [], []>} : vector<2x32xbf16>, vector<32x32xbf16>, vector<2x32xf32> -> vector<2x32xf32>
      %c0_67 = arith.constant 0 : index
      %c0_68 = arith.constant 0 : index
      %148 = vector.load %arg18[%c0_67, %c0_68] : memref<1x32xf32, #tpu.memory_space<vmem>>, vector<1x32xf32>
      %149 = vector.broadcast %148 : vector<1x32xf32> to vector<2x32xf32>
      %150 = arith.addf %147, %149 : vector<2x32xf32>
      %151 = math.tanh %150 : vector<2x32xf32>
      %152 = arith.truncf %151 : vector<2x32xf32> to vector<2x32xbf16>
      %c0_69 = arith.constant 0 : index
      %c0_70 = arith.constant 0 : index
      %153 = vector.load %arg19[%c0_69, %c0_70] : memref<32x128xbf16, #tpu.memory_space<vmem>>, vector<32x128xbf16>
      %cst_71 = arith.constant dense<0.000000e+00> : vector<2x128xf32>
      %154 = tpu.matmul %152, %153, %cst_71 {dimension_numbers = #tpu.dot_dimension_numbers<[1], [0], [0], [1], [0, 0, 1, 1], [], []>} : vector<2x32xbf16>, vector<32x128xbf16>, vector<2x128xf32> -> vector<2x128xf32>
      %c0_72 = arith.constant 0 : index
      %c0_73 = arith.constant 0 : index
      %155 = vector.load %arg20[%c0_72, %c0_73] : memref<1x128xf32, #tpu.memory_space<vmem>>, vector<1x128xf32>
      %156 = vector.broadcast %155 : vector<1x128xf32> to vector<2x128xf32>
      %157 = arith.addf %154, %156 : vector<2x128xf32>
      %c0_74 = arith.constant 0 : index
      %c0_75 = arith.constant 0 : index
      %158 = vector.load %arg21[%c0_74, %c0_75] : memref<2x128xf32, #tpu.memory_space<vmem>>, vector<2x128xf32>
      tpu.vector_store %arg21[%c0_74, %c0_75], %157 {strides = array<i32>} : memref<2x128xf32, #tpu.memory_space<vmem>>, vector<2x128xf32>,
    } else {
    }
    return
  }
  func.func @transform_0(%arg0: i32) -> (i32, i32) {
    %c0_i32 = arith.constant 0 : i32
    %c0_i32_0 = arith.constant 0 : i32
    %c0_i32_1 = arith.constant 0 : i32
    return %c0_i32, %c0_i32_0 : i32, i32
  }
  func.func @transform_1(%arg0: i32) -> (i32, i32) {
    %c0_i32 = arith.constant 0 : i32
    %c0_i32_0 = arith.constant 0 : i32
    %c0_i32_1 = arith.constant 0 : i32
    return %c0_i32, %c0_i32_0 : i32, i32
  }
  func.func @transform_2(%arg0: i32) -> (i32, i32) {
    %c0_i32 = arith.constant 0 : i32
    %c0_i32_0 = arith.constant 0 : i32
    %c0_i32_1 = arith.constant 0 : i32
    return %c0_i32, %c0_i32_0 : i32, i32
  }
  func.func @transform_3(%arg0: i32) -> (i32, i32) {
    %c0_i32 = arith.constant 0 : i32
    %c0_i32_0 = arith.constant 0 : i32
    %c0_i32_1 = arith.constant 0 : i32
    return %c0_i32, %c0_i32_0 : i32, i32
  }
  func.func @transform_4(%arg0: i32) -> (i32, i32, i32) {
    %c0_i32 = arith.constant 0 : i32
    %c0_i32_0 = arith.constant 0 : i32
    %c0_i32_1 = arith.constant 0 : i32
    return %arg0, %c0_i32, %c0_i32_0 : i32, i32, i32
  }
  func.func @transform_5(%arg0: i32) -> (i32, i32, i32) {
    %c0_i32 = arith.constant 0 : i32
    %c0_i32_0 = arith.constant 0 : i32
    %c0_i32_1 = arith.constant 0 : i32
    return %arg0, %c0_i32, %c0_i32_0 : i32, i32, i32
  }
  func.func @transform_6(%arg0: i32) -> (i32, i32, i32) {
    %c0_i32 = arith.constant 0 : i32
    %c0_i32_0 = arith.constant 0 : i32
    %c0_i32_1 = arith.constant 0 : i32
    return %arg0, %c0_i32, %c0_i32_0 : i32, i32, i32
  }
  func.func @transform_7(%arg0: i32) -> (i32, i32, i32) {
    %c0_i32 = arith.constant 0 : i32
    %c0_i32_0 = arith.constant 0 : i32
    %c0_i32_1 = arith.constant 0 : i32
    return %arg0, %c0_i32, %c0_i32_0 : i32, i32, i32
  }
  func.func @transform_8(%arg0: i32) -> (i32, i32, i32) {
    %c0_i32 = arith.constant 0 : i32
    %c0_i32_0 = arith.constant 0 : i32
    %c0_i32_1 = arith.constant 0 : i32
    return %arg0, %c0_i32, %c0_i32_0 : i32, i32, i32
  }
  func.func @transform_9(%arg0: i32) -> (i32, i32, i32) {
    %c0_i32 = arith.constant 0 : i32
    %c0_i32_0 = arith.constant 0 : i32
    %c0_i32_1 = arith.constant 0 : i32
    return %arg0, %c0_i32, %c0_i32_0 : i32, i32, i32
  }
  func.func @transform_10(%arg0: i32) -> (i32, i32, i32) {
    %c0_i32 = arith.constant 0 : i32
    %c0_i32_0 = arith.constant 0 : i32
    %c0_i32_1 = arith.constant 0 : i32
    return %arg0, %c0_i32, %c0_i32_0 : i32, i32, i32
  }
  func.func @transform_11(%arg0: i32) -> (i32, i32, i32) {
    %c0_i32 = arith.constant 0 : i32
    %c0_i32_0 = arith.constant 0 : i32
    %c0_i32_1 = arith.constant 0 : i32
    return %arg0, %c0_i32, %c0_i32_0 : i32, i32, i32
  }
  func.func @transform_12(%arg0: i32) -> (i32, i32, i32) {
    %c0_i32 = arith.constant 0 : i32
    %c0_i32_0 = arith.constant 0 : i32
    %c0_i32_1 = arith.constant 0 : i32
    return %arg0, %c0_i32, %c0_i32_0 : i32, i32, i32
  }
  func.func @transform_13(%arg0: i32) -> (i32, i32, i32) {
    %c0_i32 = arith.constant 0 : i32
    %c0_i32_0 = arith.constant 0 : i32
    %c0_i32_1 = arith.constant 0 : i32
    return %arg0, %c0_i32, %c0_i32_0 : i32, i32, i32
  }
  func.func @transform_14(%arg0: i32) -> (i32, i32, i32) {
    %c0_i32 = arith.constant 0 : i32
    %c0_i32_0 = arith.constant 0 : i32
    %c0_i32_1 = arith.constant 0 : i32
    return %arg0, %c0_i32, %c0_i32_0 : i32, i32, i32
  }
  func.func @transform_15(%arg0: i32) -> (i32, i32, i32) {
    %c0_i32 = arith.constant 0 : i32
    %c0_i32_0 = arith.constant 0 : i32
    %c0_i32_1 = arith.constant 0 : i32
    return %arg0, %c0_i32, %c0_i32_0 : i32, i32, i32
  }
  func.func @transform_16(%arg0: i32) -> (i32, i32) {
    %c0_i32 = arith.constant 0 : i32
    %c0_i32_0 = arith.constant 0 : i32
    %c0_i32_1 = arith.constant 0 : i32
    return %c0_i32, %c0_i32_0 : i32, i32
  }
  func.func @transform_17(%arg0: i32) -> (i32, i32) {
    %c0_i32 = arith.constant 0 : i32
    %c0_i32_0 = arith.constant 0 : i32
    %c0_i32_1 = arith.constant 0 : i32
    return %c0_i32, %c0_i32_0 : i32, i32
  }
  func.func @transform_18(%arg0: i32) -> (i32, i32) {
    %c0_i32 = arith.constant 0 : i32
    %c0_i32_0 = arith.constant 0 : i32
    %c0_i32_1 = arith.constant 0 : i32
    return %c0_i32, %c0_i32_0 : i32, i32
  }
  func.func @transform_19(%arg0: i32) -> (i32, i32) {
    %c0_i32 = arith.constant 0 : i32
    %c0_i32_0 = arith.constant 0 : i32
    %c0_i32_1 = arith.constant 0 : i32
    return %c0_i32, %c0_i32_0 : i32, i32
  }
  func.func @transform_20(%arg0: i32) -> (i32, i32) {
    %c0_i32 = arith.constant 0 : i32
    %c0_i32_0 = arith.constant 0 : i32
    %c0_i32_1 = arith.constant 0 : i32
    return %c0_i32, %c0_i32_0 : i32, i32
  }
}

</mosaic_0001>

<llo_original>
// kernel: bert_multilabel_forward.1
$region0: #{bert_multilabel_forward.1}
  #allocation0 [shape = 'u32[]', space=smem, size = 0x4, offset = 0x4, fixed_abs, tag = 'smem constant byte address 0x4 - core index']
  #allocation1 [shape = 'u32[144,128]{1,0:T(1,128)}', space=vmem, size = 0x12000, scoped, tag = 'internal scratch']
  #allocation2 [shape = 'f32[16,32]{1,0:T(8,128)}', space=vmem, size = 0x2000, scoped, tag = 'scratch operand']
  %s0 = inlined_call_operand.vmem [shape: f32[16,32], index: 0, kind: input, shape index: {}]
  %s1 = inlined_call_operand.vmem [shape: f32[2,8], index: 1, kind: input, shape index: {}]
  %s2 = inlined_call_operand.vmem [shape: f32[1,32], index: 2, kind: input, shape index: {}]
  %s3 = inlined_call_operand.vmem [shape: f32[1,32], index: 3, kind: input, shape index: {}]
  %s4 = inlined_call_operand.vmem [shape: bf16[2,32,96], index: 4, kind: input, shape index: {}]
  %s5 = inlined_call_operand.vmem [shape: f32[2,1,96], index: 5, kind: input, shape index: {}]
  %s6 = inlined_call_operand.vmem [shape: bf16[2,32,32], index: 6, kind: input, shape index: {}]
  %s7 = inlined_call_operand.vmem [shape: f32[2,1,32], index: 7, kind: input, shape index: {}]
  %s8 = inlined_call_operand.vmem [shape: f32[2,1,32], index: 8, kind: input, shape index: {}]
  %s9 = inlined_call_operand.vmem [shape: f32[2,1,32], index: 9, kind: input, shape index: {}]
  %s10 = inlined_call_operand.vmem [shape: bf16[2,32,64], index: 10, kind: input, shape index: {}]
  %s11 = inlined_call_operand.vmem [shape: f32[2,1,64], index: 11, kind: input, shape index: {}]
  %s12 = inlined_call_operand.vmem [shape: bf16[2,64,32], index: 12, kind: input, shape index: {}]
  %s13 = inlined_call_operand.vmem [shape: f32[2,1,32], index: 13, kind: input, shape index: {}]
  %s14 = inlined_call_operand.vmem [shape: f32[2,1,32], index: 14, kind: input, shape index: {}]
  %s15 = inlined_call_operand.vmem [shape: f32[2,1,32], index: 15, kind: input, shape index: {}]
  %s16 = inlined_call_operand.vmem [shape: bf16[32,32], index: 16, kind: input, shape index: {}]
  %s17 = inlined_call_operand.vmem [shape: f32[1,32], index: 17, kind: input, shape index: {}]
  %s18 = inlined_call_operand.vmem [shape: bf16[32,128], index: 18, kind: input, shape index: {}]
  %s19 = inlined_call_operand.vmem [shape: f32[1,128], index: 19, kind: input, shape index: {}]
  %s20 = inlined_call_operand.hbm [shape: f32[2,128], index: 20, kind: output, shape index: {}]
  %s21 = sld [smem:[#allocation0]]
  $region121: #{bert_multilabel_forward.1} parent=0
    _
  %s23 = ssub.s32 1, %s21
  %s24 = scalar_select 0, %s23, %s21
  $region1: #{bert_multilabel_forward.1} parent=0
    #allocation3 [shape = 'u8[1024]{0}', space=vmem, size = 0x400, scoped, tag = 'output window, operand 0, single buffered']
    #allocation4 [shape = 's32[2]{0}', space=sflag, size = 0x8, scoped, tag = 'scoped memory for bert_multilabel_forward.1']
    %25 = vsyncpa [#allocation4], 0
    loop: start=0, step=1, limit=4
    $region2: #{bert_multilabel_forward.1} parent=1 // loop_pre_header
      _
    $region3: #{bert_multilabel_forward.1} parent=1 // loop_header
      %s27 = sphi 0, %s31
      %p28 = scmp.ge.s32.totalorder %s27, 4
      %s35 = sphi 0, %s35
      %s37 = sphi 0, %s35
      %s38 = sphi 0, %s37
      %s52 = sphi 0, %s38
      %s56 = sphi 0, %s56
      %s58 = sphi 0, %s56
      %s59 = sphi 0, %s58
      %s73 = sphi 0, %s59
      %s77 = sphi 0, %s77
      %s79 = sphi 0, %s77
      %s80 = sphi 0, %s79
      %s94 = sphi 0, %s80
      %s98 = sphi 0, %s98
      %s100 = sphi 0, %s98
      %s101 = sphi 0, %s100
      %s115 = sphi 0, %s101
      %s121 = sphi 0, %s123
      %s124 = sphi 0, %s121
      %s125 = sphi 0, %s124
      %s141 = sphi 0, %s125
      %s147 = sphi 0, %s149
      %s150 = sphi 0, %s147
      %s151 = sphi 0, %s150
      %s167 = sphi 0, %s151
      %s173 = sphi 0, %s175
      %s176 = sphi 0, %s173
      %s177 = sphi 0, %s176
      %s193 = sphi 0, %s177
      %s199 = sphi 0, %s201
      %s202 = sphi 0, %s199
      %s203 = sphi 0, %s202
      %s219 = sphi 0, %s203
      %s225 = sphi 0, %s227
      %s228 = sphi 0, %s225
      %s229 = sphi 0, %s228
      %s245 = sphi 0, %s229
      %s251 = sphi 0, %s253
      %s254 = sphi 0, %s251
      %s255 = sphi 0, %s254
      %s271 = sphi 0, %s255
      %s277 = sphi 0, %s279
      %s280 = sphi 0, %s277
      %s281 = sphi 0, %s280
      %s297 = sphi 0, %s281
      %s303 = sphi 0, %s305
      %s306 = sphi 0, %s303
      %s307 = sphi 0, %s306
      %s323 = sphi 0, %s307
      %s329 = sphi 0, %s331
      %s332 = sphi 0, %s329
      %s333 = sphi 0, %s332
      %s349 = sphi 0, %s333
      %s355 = sphi 0, %s357
      %s358 = sphi 0, %s355
      %s359 = sphi 0, %s358
      %s375 = sphi 0, %s359
      %s381 = sphi 0, %s383
      %s384 = sphi 0, %s381
      %s385 = sphi 0, %s384
      %s401 = sphi 0, %s385
      %s407 = sphi 0, %s409
      %s410 = sphi 0, %s407
      %s411 = sphi 0, %s410
      %s427 = sphi 0, %s411
      %s431 = sphi 0, %s431
      %s433 = sphi 0, %s431
      %s434 = sphi 0, %s433
      %s448 = sphi 0, %s434
      %s452 = sphi 0, %s452
      %s454 = sphi 0, %s452
      %s455 = sphi 0, %s454
      %s469 = sphi 0, %s455
      %s473 = sphi 0, %s473
      %s475 = sphi 0, %s473
      %s476 = sphi 0, %s475
      %s490 = sphi 0, %s476
      %s494 = sphi 0, %s494
      %s496 = sphi 0, %s494
      %s497 = sphi 0, %s496
      %s511 = sphi 0, %s497
      %s515 = sphi 0, %s515
      %s517 = sphi 0, %s515
      %s518 = sphi 0, %s517
      %s532 = sphi 0, %s518
    $region4: #{bert_multilabel_forward.1} parent=1 // loop_header_branch
      %30 = sbr.rel (%p28) target = $region8
    $region5: #{bert_multilabel_forward.1} parent=1 // loop_body
      %s32 = ssub.s32 %s27, 1
      %s33 = ssub.s32 %s27, 2
      %s34 = sadd.s32 %s27, 1
      %s36 = sadd.s32 %s35, 1
      %p39 = scmp.eq.s32.totalorder %s27, 1
      %p40 = scmp.ne.s32.totalorder %s35, %s37
      %p41 = scmp.eq.s32.totalorder %s27, 0
      %p42 = por %p40, %p41
      %p43 = scmp.ne.s32.totalorder %s35, %s37
      %p44 = scmp.eq.s32.totalorder %s32, 1
      %p45 = por %p43, %p44
      %p46 = scmp.ne.s32.totalorder %s37, %s38
      %p47 = scmp.eq.s32.totalorder %s32, 0
      %p48 = por %p46, %p47
      %p49 = scmp.ne.s32.totalorder %s37, %s38
      %p50 = scmp.eq.s32.totalorder %s33, 1
      %p51 = por %p49, %p50
      %p53 = scmp.ne.s32.totalorder %s38, %s52
      %p54 = scmp.eq.s32.totalorder %s33, 0
      %p55 = por %p53, %p54
      %s57 = sadd.s32 %s56, 1
      %p60 = scmp.eq.s32.totalorder %s27, 1
      %p61 = scmp.ne.s32.totalorder %s56, %s58
      %p62 = scmp.eq.s32.totalorder %s27, 0
      %p63 = por %p61, %p62
      %p64 = scmp.ne.s32.totalorder %s56, %s58
      %p65 = scmp.eq.s32.totalorder %s32, 1
      %p66 = por %p64, %p65
      %p67 = scmp.ne.s32.totalorder %s58, %s59
      %p68 = scmp.eq.s32.totalorder %s32, 0
      %p69 = por %p67, %p68
      %p70 = scmp.ne.s32.totalorder %s58, %s59
      %p71 = scmp.eq.s32.totalorder %s33, 1
      %p72 = por %p70, %p71
      %p74 = scmp.ne.s32.totalorder %s59, %s73
      %p75 = scmp.eq.s32.totalorder %s33, 0
      %p76 = por %p74, %p75
      %s78 = sadd.s32 %s77, 1
      %p81 = scmp.eq.s32.totalorder %s27, 1
      %p82 = scmp.ne.s32.totalorder %s77, %s79
      %p83 = scmp.eq.s32.totalorder %s27, 0
      %p84 = por %p82, %p83
      %p85 = scmp.ne.s32.totalorder %s77, %s79
      %p86 = scmp.eq.s32.totalorder %s32, 1
      %p87 = por %p85, %p86
      %p88 = scmp.ne.s32.totalorder %s79, %s80
      %p89 = scmp.eq.s32.totalorder %s32, 0
      %p90 = por %p88, %p89
      %p91 = scmp.ne.s32.totalorder %s79, %s80
      %p92 = scmp.eq.s32.totalorder %s33, 1
      %p93 = por %p91, %p92
      %p95 = scmp.ne.s32.totalorder %s80, %s94
      %p96 = scmp.eq.s32.totalorder %s33, 0
      %p97 = por %p95, %p96
      %s99 = sadd.s32 %s98, 1
      %p102 = scmp.eq.s32.totalorder %s27, 1
      %p103 = scmp.ne.s32.totalorder %s98, %s100
      %p104 = scmp.eq.s32.totalorder %s27, 0
      %p105 = por %p103, %p104
      %p106 = scmp.ne.s32.totalorder %s98, %s100
      %p107 = scmp.eq.s32.totalorder %s32, 1
      %p108 = por %p106, %p107
      %p109 = scmp.ne.s32.totalorder %s100, %s101
      %p110 = scmp.eq.s32.totalorder %s32, 0
      %p111 = por %p109, %p110
      %p112 = scmp.ne.s32.totalorder %s100, %s101
      %p113 = scmp.eq.s32.totalorder %s33, 1
      %p114 = por %p112, %p113
      %p116 = scmp.ne.s32.totalorder %s101, %s115
      %p117 = scmp.eq.s32.totalorder %s33, 0
      %p118 = por %p116, %p117
      %s119 = ssub.s32 %s27, %s34
      %p120 = scmp.eq.s32.totalorder %s119, 0
      %s122 = sadd.s32 %s121, 1
      %s123 = scalar_select %p120, %s121, %s122
      %p126 = pneg %p120
      %p127 = scmp.eq.s32.totalorder %s27, 1
      %p128 = por %p126, %p127
      %p129 = scmp.ne.s32.totalorder %s121, %s124
      %p130 = scmp.eq.s32.totalorder %s27, 0
      %p131 = por %p129, %p130
      %p132 = scmp.ne.s32.totalorder %s121, %s124
      %p133 = scmp.eq.s32.totalorder %s32, 1
      %p134 = por %p132, %p133
      %p135 = scmp.ne.s32.totalorder %s124, %s125
      %p136 = scmp.eq.s32.totalorder %s32, 0
      %p137 = por %p135, %p136
      %p138 = scmp.ne.s32.totalorder %s124, %s125
      %p139 = scmp.eq.s32.totalorder %s33, 1
      %p140 = por %p138, %p139
      %p142 = scmp.ne.s32.totalorder %s125, %s141
      %p143 = scmp.eq.s32.totalorder %s33, 0
      %p144 = por %p142, %p143
      %s145 = ssub.s32 %s27, %s34
      %p146 = scmp.eq.s32.totalorder %s145, 0
      %s148 = sadd.s32 %s147, 1
      %s149 = scalar_select %p146, %s147, %s148
      %p152 = pneg %p146
      %p153 = scmp.eq.s32.totalorder %s27, 1
      %p154 = por %p152, %p153
      %p155 = scmp.ne.s32.totalorder %s147, %s150
      %p156 = scmp.eq.s32.totalorder %s27, 0
      %p157 = por %p155, %p156
      %p158 = scmp.ne.s32.totalorder %s147, %s150
      %p159 = scmp.eq.s32.totalorder %s32, 1
      %p160 = por %p158, %p159
      %p161 = scmp.ne.s32.totalorder %s150, %s151
      %p162 = scmp.eq.s32.totalorder %s32, 0
      %p163 = por %p161, %p162
      %p164 = scmp.ne.s32.totalorder %s150, %s151
      %p165 = scmp.eq.s32.totalorder %s33, 1
      %p166 = por %p164, %p165
      %p168 = scmp.ne.s32.totalorder %s151, %s167
      %p169 = scmp.eq.s32.totalorder %s33, 0
      %p170 = por %p168, %p169
      %s171 = ssub.s32 %s27, %s34
      %p172 = scmp.eq.s32.totalorder %s171, 0
      %s174 = sadd.s32 %s173, 1
      %s175 = scalar_select %p172, %s173, %s174
      %p178 = pneg %p172
      %p179 = scmp.eq.s32.totalorder %s27, 1
      %p180 = por %p178, %p179
      %p181 = scmp.ne.s32.totalorder %s173, %s176
      %p182 = scmp.eq.s32.totalorder %s27, 0
      %p183 = por %p181, %p182
      %p184 = scmp.ne.s32.totalorder %s173, %s176
      %p185 = scmp.eq.s32.totalorder %s32, 1
      %p186 = por %p184, %p185
      %p187 = scmp.ne.s32.totalorder %s176, %s177
      %p188 = scmp.eq.s32.totalorder %s32, 0
      %p189 = por %p187, %p188
      %p190 = scmp.ne.s32.totalorder %s176, %s177
      %p191 = scmp.eq.s32.totalorder %s33, 1
      %p192 = por %p190, %p191
      %p194 = scmp.ne.s32.totalorder %s177, %s193
      %p195 = scmp.eq.s32.totalorder %s33, 0
      %p196 = por %p194, %p195
      %s197 = ssub.s32 %s27, %s34
      %p198 = scmp.eq.s32.totalorder %s197, 0
      %s200 = sadd.s32 %s199, 1
      %s201 = scalar_select %p198, %s199, %s200
      %p204 = pneg %p198
      %p205 = scmp.eq.s32.totalorder %s27, 1
      %p206 = por %p204, %p205
      %p207 = scmp.ne.s32.totalorder %s199, %s202
      %p208 = scmp.eq.s32.totalorder %s27, 0
      %p209 = por %p207, %p208
      %p210 = scmp.ne.s32.totalorder %s199, %s202
      %p211 = scmp.eq.s32.totalorder %s32, 1
      %p212 = por %p210, %p211
      %p213 = scmp.ne.s32.totalorder %s202, %s203
      %p214 = scmp.eq.s32.totalorder %s32, 0
      %p215 = por %p213, %p214
      %p216 = scmp.ne.s32.totalorder %s202, %s203
      %p217 = scmp.eq.s32.totalorder %s33, 1
      %p218 = por %p216, %p217
      %p220 = scmp.ne.s32.totalorder %s203, %s219
      %p221 = scmp.eq.s32.totalorder %s33, 0
      %p222 = por %p220, %p221
      %s223 = ssub.s32 %s27, %s34
      %p224 = scmp.eq.s32.totalorder %s223, 0
      %s226 = sadd.s32 %s225, 1
      %s227 = scalar_select %p224, %s225, %s226
      %p230 = pneg %p224
      %p231 = scmp.eq.s32.totalorder %s27, 1
      %p232 = por %p230, %p231
      %p233 = scmp.ne.s32.totalorder %s225, %s228
      %p234 = scmp.eq.s32.totalorder %s27, 0
      %p235 = por %p233, %p234
      %p236 = scmp.ne.s32.totalorder %s225, %s228
      %p237 = scmp.eq.s32.totalorder %s32, 1
      %p238 = por %p236, %p237
      %p239 = scmp.ne.s32.totalorder %s228, %s229
      %p240 = scmp.eq.s32.totalorder %s32, 0
      %p241 = por %p239, %p240
      %p242 = scmp.ne.s32.totalorder %s228, %s229
      %p243 = scmp.eq.s32.totalorder %s33, 1
      %p244 = por %p242, %p243
      %p246 = scmp.ne.s32.totalorder %s229, %s245
      %p247 = scmp.eq.s32.totalorder %s33, 0
      %p248 = por %p246, %p247
      %s249 = ssub.s32 %s27, %s34
      %p250 = scmp.eq.s32.totalorder %s249, 0
      %s252 = sadd.s32 %s251, 1
      %s253 = scalar_select %p250, %s251, %s252
      %p256 = pneg %p250
      %p257 = scmp.eq.s32.totalorder %s27, 1
      %p258 = por %p256, %p257
      %p259 = scmp.ne.s32.totalorder %s251, %s254
      %p260 = scmp.eq.s32.totalorder %s27, 0
      %p261 = por %p259, %p260
      %p262 = scmp.ne.s32.totalorder %s251, %s254
      %p263 = scmp.eq.s32.totalorder %s32, 1
      %p264 = por %p262, %p263
      %p265 = scmp.ne.s32.totalorder %s254, %s255
      %p266 = scmp.eq.s32.totalorder %s32, 0
      %p267 = por %p265, %p266
      %p268 = scmp.ne.s32.totalorder %s254, %s255
      %p269 = scmp.eq.s32.totalorder %s33, 1
      %p270 = por %p268, %p269
      %p272 = scmp.ne.s32.totalorder %s255, %s271
      %p273 = scmp.eq.s32.totalorder %s33, 0
      %p274 = por %p272, %p273
      %s275 = ssub.s32 %s27, %s34
      %p276 = scmp.eq.s32.totalorder %s275, 0
      %s278 = sadd.s32 %s277, 1
      %s279 = scalar_select %p276, %s277, %s278
      %p282 = pneg %p276
      %p283 = scmp.eq.s32.totalorder %s27, 1
      %p284 = por %p282, %p283
      %p285 = scmp.ne.s32.totalorder %s277, %s280
      %p286 = scmp.eq.s32.totalorder %s27, 0
      %p287 = por %p285, %p286
      %p288 = scmp.ne.s32.totalorder %s277, %s280
      %p289 = scmp.eq.s32.totalorder %s32, 1
      %p290 = por %p288, %p289
      %p291 = scmp.ne.s32.totalorder %s280, %s281
      %p292 = scmp.eq.s32.totalorder %s32, 0
      %p293 = por %p291, %p292
      %p294 = scmp.ne.s32.totalorder %s280, %s281
      %p295 = scmp.eq.s32.totalorder %s33, 1
      %p296 = por %p294, %p295
      %p298 = scmp.ne.s32.totalorder %s281, %s297
      %p299 = scmp.eq.s32.totalorder %s33, 0
      %p300 = por %p298, %p299
      %s301 = ssub.s32 %s27, %s34
      %p302 = scmp.eq.s32.totalorder %s301, 0
      %s304 = sadd.s32 %s303, 1
      %s305 = scalar_select %p302, %s303, %s304
      %p308 = pneg %p302
      %p309 = scmp.eq.s32.totalorder %s27, 1
      %p310 = por %p308, %p309
      %p311 = scmp.ne.s32.totalorder %s303, %s306
      %p312 = scmp.eq.s32.totalorder %s27, 0
      %p313 = por %p311, %p312
      %p314 = scmp.ne.s32.totalorder %s303, %s306
      %p315 = scmp.eq.s32.totalorder %s32, 1
      %p316 = por %p314, %p315
      %p317 = scmp.ne.s32.totalorder %s306, %s307
      %p318 = scmp.eq.s32.totalorder %s32, 0
      %p319 = por %p317, %p318
      %p320 = scmp.ne.s32.totalorder %s306, %s307
      %p321 = scmp.eq.s32.totalorder %s33, 1
      %p322 = por %p320, %p321
      %p324 = scmp.ne.s32.totalorder %s307, %s323
      %p325 = scmp.eq.s32.totalorder %s33, 0
      %p326 = por %p324, %p325
      %s327 = ssub.s32 %s27, %s34
      %p328 = scmp.eq.s32.totalorder %s327, 0
      %s330 = sadd.s32 %s329, 1
      %s331 = scalar_select %p328, %s329, %s330
      %p334 = pneg %p328
      %p335 = scmp.eq.s32.totalorder %s27, 1
      %p336 = por %p334, %p335
      %p337 = scmp.ne.s32.totalorder %s329, %s332
      %p338 = scmp.eq.s32.totalorder %s27, 0
      %p339 = por %p337, %p338
      %p340 = scmp.ne.s32.totalorder %s329, %s332
      %p341 = scmp.eq.s32.totalorder %s32, 1
      %p342 = por %p340, %p341
      %p343 = scmp.ne.s32.totalorder %s332, %s333
      %p344 = scmp.eq.s32.totalorder %s32, 0
      %p345 = por %p343, %p344
      %p346 = scmp.ne.s32.totalorder %s332, %s333
      %p347 = scmp.eq.s32.totalorder %s33, 1
      %p348 = por %p346, %p347
      %p350 = scmp.ne.s32.totalorder %s333, %s349
      %p351 = scmp.eq.s32.totalorder %s33, 0
      %p352 = por %p350, %p351
      %s353 = ssub.s32 %s27, %s34
      %p354 = scmp.eq.s32.totalorder %s353, 0
      %s356 = sadd.s32 %s355, 1
      %s357 = scalar_select %p354, %s355, %s356
      %p360 = pneg %p354
      %p361 = scmp.eq.s32.totalorder %s27, 1
      %p362 = por %p360, %p361
      %p363 = scmp.ne.s32.totalorder %s355, %s358
      %p364 = scmp.eq.s32.totalorder %s27, 0
      %p365 = por %p363, %p364
      %p366 = scmp.ne.s32.totalorder %s355, %s358
      %p367 = scmp.eq.s32.totalorder %s32, 1
      %p368 = por %p366, %p367
      %p369 = scmp.ne.s32.totalorder %s358, %s359
      %p370 = scmp.eq.s32.totalorder %s32, 0
      %p371 = por %p369, %p370
      %p372 = scmp.ne.s32.totalorder %s358, %s359
      %p373 = scmp.eq.s32.totalorder %s33, 1
      %p374 = por %p372, %p373
      %p376 = scmp.ne.s32.totalorder %s359, %s375
      %p377 = scmp.eq.s32.totalorder %s33, 0
      %p378 = por %p376, %p377
      %s379 = ssub.s32 %s27, %s34
      %p380 = scmp.eq.s32.totalorder %s379, 0
      %s382 = sadd.s32 %s381, 1
      %s383 = scalar_select %p380, %s381, %s382
      %p386 = pneg %p380
      %p387 = scmp.eq.s32.totalorder %s27, 1
      %p388 = por %p386, %p387
      %p389 = scmp.ne.s32.totalorder %s381, %s384
      %p390 = scmp.eq.s32.totalorder %s27, 0
      %p391 = por %p389, %p390
      %p392 = scmp.ne.s32.totalorder %s381, %s384
      %p393 = scmp.eq.s32.totalorder %s32, 1
      %p394 = por %p392, %p393
      %p395 = scmp.ne.s32.totalorder %s384, %s385
      %p396 = scmp.eq.s32.totalorder %s32, 0
      %p397 = por %p395, %p396
      %p398 = scmp.ne.s32.totalorder %s384, %s385
      %p399 = scmp.eq.s32.totalorder %s33, 1
      %p400 = por %p398, %p399
      %p402 = scmp.ne.s32.totalorder %s385, %s401
      %p403 = scmp.eq.s32.totalorder %s33, 0
      %p404 = por %p402, %p403
      %s405 = ssub.s32 %s27, %s34
      %p406 = scmp.eq.s32.totalorder %s405, 0
      %s408 = sadd.s32 %s407, 1
      %s409 = scalar_select %p406, %s407, %s408
      %p412 = pneg %p406
      %p413 = scmp.eq.s32.totalorder %s27, 1
      %p414 = por %p412, %p413
      %p415 = scmp.ne.s32.totalorder %s407, %s410
      %p416 = scmp.eq.s32.totalorder %s27, 0
      %p417 = por %p415, %p416
      %p418 = scmp.ne.s32.totalorder %s407, %s410
      %p419 = scmp.eq.s32.totalorder %s32, 1
      %p420 = por %p418, %p419
      %p421 = scmp.ne.s32.totalorder %s410, %s411
      %p422 = scmp.eq.s32.totalorder %s32, 0
      %p423 = por %p421, %p422
      %p424 = scmp.ne.s32.totalorder %s410, %s411
      %p425 = scmp.eq.s32.totalorder %s33, 1
      %p426 = por %p424, %p425
      %p428 = scmp.ne.s32.totalorder %s411, %s427
      %p429 = scmp.eq.s32.totalorder %s33, 0
      %p430 = por %p428, %p429
      %s432 = sadd.s32 %s431, 1
      %p435 = scmp.eq.s32.totalorder %s27, 1
      %p436 = scmp.ne.s32.totalorder %s431, %s433
      %p437 = scmp.eq.s32.totalorder %s27, 0
      %p438 = por %p436, %p437
      %p439 = scmp.ne.s32.totalorder %s431, %s433
      %p440 = scmp.eq.s32.totalorder %s32, 1
      %p441 = por %p439, %p440
      %p442 = scmp.ne.s32.totalorder %s433, %s434
      %p443 = scmp.eq.s32.totalorder %s32, 0
      %p444 = por %p442, %p443
      %p445 = scmp.ne.s32.totalorder %s433, %s434
      %p446 = scmp.eq.s32.totalorder %s33, 1
      %p447 = por %p445, %p446
      %p449 = scmp.ne.s32.totalorder %s434, %s448
      %p450 = scmp.eq.s32.totalorder %s33, 0
      %p451 = por %p449, %p450
      %s453 = sadd.s32 %s452, 1
      %p456 = scmp.eq.s32.totalorder %s27, 1
      %p457 = scmp.ne.s32.totalorder %s452, %s454
      %p458 = scmp.eq.s32.totalorder %s27, 0
      %p459 = por %p457, %p458
      %p460 = scmp.ne.s32.totalorder %s452, %s454
      %p461 = scmp.eq.s32.totalorder %s32, 1
      %p462 = por %p460, %p461
      %p463 = scmp.ne.s32.totalorder %s454, %s455
      %p464 = scmp.eq.s32.totalorder %s32, 0
      %p465 = por %p463, %p464
      %p466 = scmp.ne.s32.totalorder %s454, %s455
      %p467 = scmp.eq.s32.totalorder %s33, 1
      %p468 = por %p466, %p467
      %p470 = scmp.ne.s32.totalorder %s455, %s469
      %p471 = scmp.eq.s32.totalorder %s33, 0
      %p472 = por %p470, %p471
      %s474 = sadd.s32 %s473, 1
      %p477 = scmp.eq.s32.totalorder %s27, 1
      %p478 = scmp.ne.s32.totalorder %s473, %s475
      %p479 = scmp.eq.s32.totalorder %s27, 0
      %p480 = por %p478, %p479
      %p481 = scmp.ne.s32.totalorder %s473, %s475
      %p482 = scmp.eq.s32.totalorder %s32, 1
      %p483 = por %p481, %p482
      %p484 = scmp.ne.s32.totalorder %s475, %s476
      %p485 = scmp.eq.s32.totalorder %s32, 0
      %p486 = por %p484, %p485
      %p487 = scmp.ne.s32.totalorder %s475, %s476
      %p488 = scmp.eq.s32.totalorder %s33, 1
      %p489 = por %p487, %p488
      %p491 = scmp.ne.s32.totalorder %s476, %s490
      %p492 = scmp.eq.s32.totalorder %s33, 0
      %p493 = por %p491, %p492
      %s495 = sadd.s32 %s494, 1
      %p498 = scmp.eq.s32.totalorder %s27, 1
      %p499 = scmp.ne.s32.totalorder %s494, %s496
      %p500 = scmp.eq.s32.totalorder %s27, 0
      %p501 = por %p499, %p500
      %p502 = scmp.ne.s32.totalorder %s494, %s496
      %p503 = scmp.eq.s32.totalorder %s32, 1
      %p504 = por %p502, %p503
      %p505 = scmp.ne.s32.totalorder %s496, %s497
      %p506 = scmp.eq.s32.totalorder %s32, 0
      %p507 = por %p505, %p506
      %p508 = scmp.ne.s32.totalorder %s496, %s497
      %p509 = scmp.eq.s32.totalorder %s33, 1
      %p510 = por %p508, %p509
      %p512 = scmp.ne.s32.totalorder %s497, %s511
      %p513 = scmp.eq.s32.totalorder %s33, 0
      %p514 = por %p512, %p513
      %s516 = sadd.s32 %s515, 1
      %p519 = scmp.eq.s32.totalorder %s27, 1
      %p520 = scmp.ne.s32.totalorder %s515, %s517
      %p521 = scmp.eq.s32.totalorder %s27, 0
      %p522 = por %p520, %p521
      %p523 = scmp.ne.s32.totalorder %s515, %s517
      %p524 = scmp.eq.s32.totalorder %s32, 1
      %p525 = por %p523, %p524
      %p526 = scmp.ne.s32.totalorder %s517, %s518
      %p527 = scmp.eq.s32.totalorder %s32, 0
      %p528 = por %p526, %p527
      %p529 = scmp.ne.s32.totalorder %s517, %s518
      %p530 = scmp.eq.s32.totalorder %s33, 1
      %p531 = por %p529, %p530
      %p533 = scmp.ne.s32.totalorder %s518, %s532
      %p534 = scmp.eq.s32.totalorder %s33, 0
      %p535 = por %p533, %p534
      %p536 = scmp.le.s32.totalorder 1, %s27
      %p537 = scmp.lt.s32.totalorder %s27, 3
      %p538 = pnand %p536, %p537
      %p539 = pneg %p538
      // Predicated region
      $region9: #{bert_multilabel_forward.1} parent=5 // pred_check
        _
      $region10: #{bert_multilabel_forward.1} parent=5 // pred_check_branch
        %541 = sbr.rel (%p538) target = $region12
      $region11: #{bert_multilabel_forward.1} parent=5 // pred_region
        %s542 = ssub.s32 %s27, 1
        // Predicated region
        $region13: #{bert_multilabel_forward.1} parent=11 // pred_check
          %p543 = pneg %p48
        $region14: #{bert_multilabel_forward.1} parent=11 // pred_check_branch
          %545 = sbr.rel (%p543) target = $region16
        $region15: #{bert_multilabel_forward.1} parent=11 // pred_region
          _
        $region16: #{bert_multilabel_forward.1} parent=11 // pred_fallthru
          _
        // Predicated region
        $region17: #{bert_multilabel_forward.1} parent=11 // pred_check
          %p546 = pneg %p69
        $region18: #{bert_multilabel_forward.1} parent=11 // pred_check_branch
          %548 = sbr.rel (%p546) target = $region20
        $region19: #{bert_multilabel_forward.1} parent=11 // pred_region
          _
        $region20: #{bert_multilabel_forward.1} parent=11 // pred_fallthru
          _
        // Predicated region
        $region21: #{bert_multilabel_forward.1} parent=11 // pred_check
          %p549 = pneg %p90
        $region22: #{bert_multilabel_forward.1} parent=11 // pred_check_branch
          %551 = sbr.rel (%p549) target = $region24
        $region23: #{bert_multilabel_forward.1} parent=11 // pred_region
          _
        $region24: #{bert_multilabel_forward.1} parent=11 // pred_fallthru
          _
        // Predicated region
        $region25: #{bert_multilabel_forward.1} parent=11 // pred_check
          %p552 = pneg %p111
        $region26: #{bert_multilabel_forward.1} parent=11 // pred_check_branch
          %554 = sbr.rel (%p552) target = $region28
        $region27: #{bert_multilabel_forward.1} parent=11 // pred_region
          _
        $region28: #{bert_multilabel_forward.1} parent=11 // pred_fallthru
          _
        // Predicated region
        $region29: #{bert_multilabel_forward.1} parent=11 // pred_check
          %p555 = pneg %p444
        $region30: #{bert_multilabel_forward.1} parent=11 // pred_check_branch
          %557 = sbr.rel (%p555) target = $region32
        $region31: #{bert_multilabel_forward.1} parent=11 // pred_region
          _
        $region32: #{bert_multilabel_forward.1} parent=11 // pred_fallthru
          _
        // Predicated region
        $region33: #{bert_multilabel_forward.1} parent=11 // pred_check
          %p558 = pneg %p465
        $region34: #{bert_multilabel_forward.1} parent=11 // pred_check_branch
          %560 = sbr.rel (%p558) target = $region36
        $region35: #{bert_multilabel_forward.1} parent=11 // pred_region
          _
        $region36: #{bert_multilabel_forward.1} parent=11 // pred_fallthru
          _
        // Predicated region
        $region37: #{bert_multilabel_forward.1} parent=11 // pred_check
          %p561 = pneg %p486
        $region38: #{bert_multilabel_forward.1} parent=11 // pred_check_branch
          %563 = sbr.rel (%p561) target = $region40
        $region39: #{bert_multilabel_forward.1} parent=11 // pred_region
          _
        $region40: #{bert_multilabel_forward.1} parent=11 // pred_fallthru
          _
        // Predicated region
        $region41: #{bert_multilabel_forward.1} parent=11 // pred_check
          %p564 = pneg %p507
        $region42: #{bert_multilabel_forward.1} parent=11 // pred_check_branch
          %566 = sbr.rel (%p564) target = $region44
        $region43: #{bert_multilabel_forward.1} parent=11 // pred_region
          _
        $region44: #{bert_multilabel_forward.1} parent=11 // pred_fallthru
          _
      $region12: #{bert_multilabel_forward.1} parent=5 // pred_fallthru
        _
      %p567 = scmp.lt.s32.totalorder %s27, 2
      // Predicated region
      $region45: #{bert_multilabel_forward.1} parent=5 // pred_check
        %p568 = pneg %p567
      $region46: #{bert_multilabel_forward.1} parent=5 // pred_check_branch
        %570 = sbr.rel (%p568) target = $region48
      $region47: #{bert_multilabel_forward.1} parent=5 // pred_region
        // Predicated region
        $region49: #{bert_multilabel_forward.1} parent=47 // pred_check
          %p571 = pneg %p131
        $region50: #{bert_multilabel_forward.1} parent=47 // pred_check_branch
          %573 = sbr.rel (%p571) target = $region52
        $region51: #{bert_multilabel_forward.1} parent=47 // pred_region
          %p574 = scmp.lt.s32.totalorder %s27, 1
          %s575 = scalar_select %p574, %s27, 1
          %s576 = smul.addr %s575, 4
          %s577 = smul.addr %s576, 4
          %s578 = scalar_lea.vmem %s4, %s577
        $region52: #{bert_multilabel_forward.1} parent=47 // pred_fallthru
          _
        // Predicated region
        $region53: #{bert_multilabel_forward.1} parent=47 // pred_check
          %p579 = pneg %p157
        $region54: #{bert_multilabel_forward.1} parent=47 // pred_check_branch
          %581 = sbr.rel (%p579) target = $region56
        $region55: #{bert_multilabel_forward.1} parent=47 // pred_region
          %p582 = scmp.lt.s32.totalorder %s27, 1
          %s583 = scalar_select %p582, %s27, 1
          %s584 = scalar_lea.vmem %s5, %s583
        $region56: #{bert_multilabel_forward.1} parent=47 // pred_fallthru
          _
        // Predicated region
        $region57: #{bert_multilabel_forward.1} parent=47 // pred_check
          %p585 = pneg %p183
        $region58: #{bert_multilabel_forward.1} parent=47 // pred_check_branch
          %587 = sbr.rel (%p585) target = $region60
        $region59: #{bert_multilabel_forward.1} parent=47 // pred_region
          %p588 = scmp.lt.s32.totalorder %s27, 1
          %s589 = scalar_select %p588, %s27, 1
          %s590 = smul.addr %s589, 4
          %s591 = smul.addr %s590, 4
          %s592 = scalar_lea.vmem %s6, %s591
        $region60: #{bert_multilabel_forward.1} parent=47 // pred_fallthru
          _
        // Predicated region
        $region61: #{bert_multilabel_forward.1} parent=47 // pred_check
          %p593 = pneg %p209
        $region62: #{bert_multilabel_forward.1} parent=47 // pred_check_branch
          %595 = sbr.rel (%p593) target = $region64
        $region63: #{bert_multilabel_forward.1} parent=47 // pred_region
          %p596 = scmp.lt.s32.totalorder %s27, 1
          %s597 = scalar_select %p596, %s27, 1
          %s598 = scalar_lea.vmem %s7, %s597
        $region64: #{bert_multilabel_forward.1} parent=47 // pred_fallthru
          _
        // Predicated region
        $region65: #{bert_multilabel_forward.1} parent=47 // pred_check
          %p599 = pneg %p235
        $region66: #{bert_multilabel_forward.1} parent=47 // pred_check_branch
          %601 = sbr.rel (%p599) target = $region68
        $region67: #{bert_multilabel_forward.1} parent=47 // pred_region
          %p602 = scmp.lt.s32.totalorder %s27, 1
          %s603 = scalar_select %p602, %s27, 1
          %s604 = scalar_lea.vmem %s8, %s603
        $region68: #{bert_multilabel_forward.1} parent=47 // pred_fallthru
          _
        // Predicated region
        $region69: #{bert_multilabel_forward.1} parent=47 // pred_check
          %p605 = pneg %p261
        $region70: #{bert_multilabel_forward.1} parent=47 // pred_check_branch
          %607 = sbr.rel (%p605) target = $region72
        $region71: #{bert_multilabel_forward.1} parent=47 // pred_region
          %p608 = scmp.lt.s32.totalorder %s27, 1
          %s609 = scalar_select %p608, %s27, 1
          %s610 = scalar_lea.vmem %s9, %s609
        $region72: #{bert_multilabel_forward.1} parent=47 // pred_fallthru
          _
        // Predicated region
        $region73: #{bert_multilabel_forward.1} parent=47 // pred_check
          %p611 = pneg %p287
        $region74: #{bert_multilabel_forward.1} parent=47 // pred_check_branch
          %613 = sbr.rel (%p611) target = $region76
        $region75: #{bert_multilabel_forward.1} parent=47 // pred_region
          %p614 = scmp.lt.s32.totalorder %s27, 1
          %s615 = scalar_select %p614, %s27, 1
          %s616 = smul.addr %s615, 4
          %s617 = smul.addr %s616, 4
          %s618 = scalar_lea.vmem %s10, %s617
        $region76: #{bert_multilabel_forward.1} parent=47 // pred_fallthru
          _
        // Predicated region
        $region77: #{bert_multilabel_forward.1} parent=47 // pred_check
          %p619 = pneg %p313
        $region78: #{bert_multilabel_forward.1} parent=47 // pred_check_branch
          %621 = sbr.rel (%p619) target = $region80
        $region79: #{bert_multilabel_forward.1} parent=47 // pred_region
          %p622 = scmp.lt.s32.totalorder %s27, 1
          %s623 = scalar_select %p622, %s27, 1
          %s624 = scalar_lea.vmem %s11, %s623
        $region80: #{bert_multilabel_forward.1} parent=47 // pred_fallthru
          _
        // Predicated region
        $region81: #{bert_multilabel_forward.1} parent=47 // pred_check
          %p625 = pneg %p339
        $region82: #{bert_multilabel_forward.1} parent=47 // pred_check_branch
          %627 = sbr.rel (%p625) target = $region84
        $region83: #{bert_multilabel_forward.1} parent=47 // pred_region
          %p628 = scmp.lt.s32.totalorder %s27, 1
          %s629 = scalar_select %p628, %s27, 1
          %s630 = smul.addr %s629, 8
          %s631 = smul.addr %s630, 4
          %s632 = scalar_lea.vmem %s12, %s631
        $region84: #{bert_multilabel_forward.1} parent=47 // pred_fallthru
          _
        // Predicated region
        $region85: #{bert_multilabel_forward.1} parent=47 // pred_check
          %p633 = pneg %p365
        $region86: #{bert_multilabel_forward.1} parent=47 // pred_check_branch
          %635 = sbr.rel (%p633) target = $region88
        $region87: #{bert_multilabel_forward.1} parent=47 // pred_region
          %p636 = scmp.lt.s32.totalorder %s27, 1
          %s637 = scalar_select %p636, %s27, 1
          %s638 = scalar_lea.vmem %s13, %s637
        $region88: #{bert_multilabel_forward.1} parent=47 // pred_fallthru
          _
        // Predicated region
        $region89: #{bert_multilabel_forward.1} parent=47 // pred_check
          %p639 = pneg %p391
        $region90: #{bert_multilabel_forward.1} parent=47 // pred_check_branch
          %641 = sbr.rel (%p639) target = $region92
        $region91: #{bert_multilabel_forward.1} parent=47 // pred_region
          %p642 = scmp.lt.s32.totalorder %s27, 1
          %s643 = scalar_select %p642, %s27, 1
          %s644 = scalar_lea.vmem %s14, %s643
        $region92: #{bert_multilabel_forward.1} parent=47 // pred_fallthru
          _
        // Predicated region
        $region93: #{bert_multilabel_forward.1} parent=47 // pred_check
          %p645 = pneg %p417
        $region94: #{bert_multilabel_forward.1} parent=47 // pred_check_branch
          %647 = sbr.rel (%p645) target = $region96
        $region95: #{bert_multilabel_forward.1} parent=47 // pred_region
          %p648 = scmp.lt.s32.totalorder %s27, 1
          %s649 = scalar_select %p648, %s27, 1
          %s650 = scalar_lea.vmem %s15, %s649
        $region96: #{bert_multilabel_forward.1} parent=47 // pred_fallthru
          _
      $region48: #{bert_multilabel_forward.1} parent=5 // pred_fallthru
        _
      %p651 = scmp.le.s32.totalorder 1, %s27
      %p652 = scmp.lt.s32.totalorder %s27, 3
      %p653 = pnand %p651, %p652
      %p654 = pneg %p653
      // Predicated region
      $region97: #{bert_multilabel_forward.1} parent=5 // pred_check
        _
      $region98: #{bert_multilabel_forward.1} parent=5 // pred_check_branch
        %656 = sbr.rel (%p653) target = $region100
      $region99: #{bert_multilabel_forward.1} parent=5 // pred_region
        %s657 = ssub.s32 %s27, 1
        %p658 = pneg %p48
        %p659 = pneg %p45
        %p660 = pneg %p69
        %p661 = pneg %p66
        %p662 = pneg %p90
        %p663 = pneg %p87
        %p664 = pneg %p111
        %p665 = pneg %p108
        %p666 = scmp.lt.s32.totalorder %s32, 1
        %s667 = scalar_select %p666, %s32, 1
        %s668 = smul.addr %s667, 4
        %s669 = smul.addr %s668, 4
        %s670 = scalar_lea.vmem %s4, %s669
        %p671 = pneg %p137
        %p672 = pneg %p134
        %p673 = scmp.lt.s32.totalorder %s32, 1
        %s674 = scalar_select %p673, %s32, 1
        %s675 = scalar_lea.vmem %s5, %s674
        %p676 = pneg %p163
        %p677 = pneg %p160
        %p678 = scmp.lt.s32.totalorder %s32, 1
        %s679 = scalar_select %p678, %s32, 1
        %s680 = smul.addr %s679, 4
        %s681 = smul.addr %s680, 4
        %s682 = scalar_lea.vmem %s6, %s681
        %p683 = pneg %p189
        %p684 = pneg %p186
        %p685 = scmp.lt.s32.totalorder %s32, 1
        %s686 = scalar_select %p685, %s32, 1
        %s687 = scalar_lea.vmem %s7, %s686
        %p688 = pneg %p215
        %p689 = pneg %p212
        %p690 = scmp.lt.s32.totalorder %s32, 1
        %s691 = scalar_select %p690, %s32, 1
        %s692 = scalar_lea.vmem %s8, %s691
        %p693 = pneg %p241
        %p694 = pneg %p238
        %p695 = scmp.lt.s32.totalorder %s32, 1
        %s696 = scalar_select %p695, %s32, 1
        %s697 = scalar_lea.vmem %s9, %s696
        %p698 = pneg %p267
        %p699 = pneg %p264
        %p700 = scmp.lt.s32.totalorder %s32, 1
        %s701 = scalar_select %p700, %s32, 1
        %s702 = smul.addr %s701, 4
        %s703 = smul.addr %s702, 4
        %s704 = scalar_lea.vmem %s10, %s703
        %p705 = pneg %p293
        %p706 = pneg %p290
        %p707 = scmp.lt.s32.totalorder %s32, 1
        %s708 = scalar_select %p707, %s32, 1
        %s709 = scalar_lea.vmem %s11, %s708
        %p710 = pneg %p319
        %p711 = pneg %p316
        %p712 = scmp.lt.s32.totalorder %s32, 1
        %s713 = scalar_select %p712, %s32, 1
        %s714 = smul.addr %s713, 8
        %s715 = smul.addr %s714, 4
        %s716 = scalar_lea.vmem %s12, %s715
        %p717 = pneg %p345
        %p718 = pneg %p342
        %p719 = scmp.lt.s32.totalorder %s32, 1
        %s720 = scalar_select %p719, %s32, 1
        %s721 = scalar_lea.vmem %s13, %s720
        %p722 = pneg %p371
        %p723 = pneg %p368
        %p724 = scmp.lt.s32.totalorder %s32, 1
        %s725 = scalar_select %p724, %s32, 1
        %s726 = scalar_lea.vmem %s14, %s725
        %p727 = pneg %p397
        %p728 = pneg %p394
        %p729 = scmp.lt.s32.totalorder %s32, 1
        %s730 = scalar_select %p729, %s32, 1
        %s731 = scalar_lea.vmem %s15, %s730
        %p732 = pneg %p423
        %p733 = pneg %p420
        %p734 = pneg %p444
        %p735 = pneg %p441
        %p736 = pneg %p465
        %p737 = pneg %p462
        %p738 = pneg %p486
        %p739 = pneg %p483
        %p740 = pneg %p507
        %p741 = pneg %p504
        %p742 = pneg %p528
        %p743 = pneg %p525
        %p744 = scmp.lt.s32.totalorder %s32, 1
        %s745 = scalar_select %p744, %s32, 1
        %s746 = smul.addr %s745, 4
        %s747 = smul.addr %s746, 4
        %s748 = scalar_lea.vmem %s4, %s747
        %p749 = scmp.lt.s32.totalorder %s32, 1
        %s750 = scalar_select %p749, %s32, 1
        %s751 = scalar_lea.vmem %s5, %s750
        %p752 = scmp.lt.s32.totalorder %s32, 1
        %s753 = scalar_select %p752, %s32, 1
        %s754 = smul.addr %s753, 4
        %s755 = smul.addr %s754, 4
        %s756 = scalar_lea.vmem %s6, %s755
        %p757 = scmp.lt.s32.totalorder %s32, 1
        %s758 = scalar_select %p757, %s32, 1
        %s759 = scalar_lea.vmem %s7, %s758
        %p760 = scmp.lt.s32.totalorder %s32, 1
        %s761 = scalar_select %p760, %s32, 1
        %s762 = scalar_lea.vmem %s8, %s761
        %p763 = scmp.lt.s32.totalorder %s32, 1
        %s764 = scalar_select %p763, %s32, 1
        %s765 = scalar_lea.vmem %s9, %s764
        %p766 = scmp.lt.s32.totalorder %s32, 1
        %s767 = scalar_select %p766, %s32, 1
        %s768 = smul.addr %s767, 4
        %s769 = smul.addr %s768, 4
        %s770 = scalar_lea.vmem %s10, %s769
        %p771 = scmp.lt.s32.totalorder %s32, 1
        %s772 = scalar_select %p771, %s32, 1
        %s773 = scalar_lea.vmem %s11, %s772
        %p774 = scmp.lt.s32.totalorder %s32, 1
        %s775 = scalar_select %p774, %s32, 1
        %s776 = smul.addr %s775, 8
        %s777 = smul.addr %s776, 4
        %s778 = scalar_lea.vmem %s12, %s777
        %p779 = scmp.lt.s32.totalorder %s32, 1
        %s780 = scalar_select %p779, %s32, 1
        %s781 = scalar_lea.vmem %s13, %s780
        %p782 = scmp.lt.s32.totalorder %s32, 1
        %s783 = scalar_select %p782, %s32, 1
        %s784 = scalar_lea.vmem %s14, %s783
        %p785 = scmp.lt.s32.totalorder %s32, 1
        %s786 = scalar_select %p785, %s32, 1
        %s787 = scalar_lea.vmem %s15, %s786
        %p789 = scmp.eq.s32.totalorder %s32, 0
        // Predicated region
        $region101: #{bert_multilabel_forward.1} parent=99 // pred_check
          %p790 = pneg %p789
        $region102: #{bert_multilabel_forward.1} parent=99 // pred_check_branch
          %792 = sbr.rel (%p790) target = $region104
        $region103: #{bert_multilabel_forward.1} parent=99 // pred_region
          %v793 = vld [vmem:[%s0] sm:$0xff]
          %v794 = vld [vmem:[%s0 + $0x8] sm:$0xff]
          %v795 = vld [vmem:[%s2] sm:$0x1]
          %v796 = vld [vmem:[%s3] sm:$0x1]
          %vm797 = vcmask 261120
          %v798 = vsel %vm797, %v793, 0.0
          %799 = vadd.xlane.f32.xlu0 %v798
          %v800 = vpop.xlane.xlu0 %799
          %v801 = vsel %vm797, %v794, 0.0
          %802 = vadd.xlane.f32.xlu0 %v801
          %v803 = vpop.xlane.xlu0 %802
          %v804 = vrcp.pop 32.0
          %v805 = vmul.f32 %v800, %v804
          %v806 = vmul.f32 %v803, %v804
          %v807 = vsub.f32 %v793, %v805
          %v808 = vsub.f32 %v794, %v806
          %v809 = vmul.f32 %v807, %v807
          %v810 = vmul.f32 %v808, %v808
          %v811 = vsel %vm797, %v809, 0.0
          %812 = vadd.xlane.f32.xlu0 %v811
          %v813 = vpop.xlane.xlu0 %812
          %v814 = vsel %vm797, %v810, 0.0
          %815 = vadd.xlane.f32.xlu0 %v814
          %v816 = vpop.xlane.xlu0 %815
          %v817 = vmul.f32 %v813, %v804
          %v818 = vmul.f32 %v816, %v804
          %v819 = vadd.f32 %v817, 1e-12
          %v820 = vadd.f32 %v818, 1e-12
          %v821 = vrsqrt.pop %v819
          %v822 = vrsqrt.pop %v820
          %v823 = vmul.f32 %v807, %v821
          %v824 = vmul.f32 %v808, %v822
          %v826 = vlaneseq
          %v827 = vshrl.u32 %v826, 7
          %v828 = vsub.s32 0, %v827
          %v829 = vrot.slane %v795, %v828
          %v831 = vmul.f32 %v823, %v829
          %v832 = vmul.f32 %v824, %v829
          %v834 = vlaneseq
          %v835 = vshrl.u32 %v834, 7
          %v836 = vsub.s32 0, %v835
          %v837 = vrot.slane %v796, %v836
          %v839 = vadd.f32 %v831, %v837
          %v840 = vadd.f32 %v832, %v837
          %841 = vst.msk [vmem:[#allocation2] sm:$0xff] %vm797, %v839
          %842 = vst.msk [vmem:[#allocation2 + $0x8] sm:$0xff] %vm797, %v840
        $region104: #{bert_multilabel_forward.1} parent=99 // pred_fallthru
          _
        %v843 = vld [vmem:[#allocation2] sm:$0xff]
        %v844 = vld [vmem:[#allocation2 + $0x8] sm:$0xff]
        %v845 = vpack.c.bf16 %v844, %v843
        %v846 = vld [vmem:[%s748] sm:$0xf]
        %v847 = vld [vmem:[%s748 + $0x4] sm:$0xf]
        %v848 = vld [vmem:[%s748 + $0x8] sm:$0xf]
        %v849 = vld [vmem:[%s748 + $0xc] sm:$0xf]
        %v850 = vld [vmem:[%s751] sm:$0x1]
        %v852 = vlaneseq
        %v853 = vshrl.u32 %v852, 7
        %v854 = vsub.s32 0, %v853
        %v855 = vrot.slane %v850, %v854
        %v861 = vunpack.c.l.b16 %v846
        %v862 = vunpack.c.l.b16 %v847
        %v863 = vunpack.c.l.b16 %v848
        %v864 = vunpack.c.l.b16 %v849
        %v865 = vpack.c.b16 %v862, %v861
        %v866 = vpack.c.b16 %v864, %v863
        %vm869 = vcmask 261120
        %v871 = vsel %vm869, %v845, 0
        %873 = vmatprep.subr.bf16.mxu0 0
        %874 = vmatpush1.bf16.msra.mxu0 %v865
        %875 = vmatprep.subr.bf16.mxu0 0
        %876 = vmatpush1.bf16.msra.mxu0 %v866
        %877 = vmatprep.subr.bf16.mxu0 0
        %878 = vmatpush1.bf16.msra.mxu0 0
        %879 = vmatprep.subr.bf16.mxu0 0
        %880 = vmatpush1.bf16.msra.mxu0 0
        %881 = vmatprep.subr.bf16.mxu0 0
        %882 = vmatpush1.bf16.msra.mxu0 0
        %883 = vmatprep.subr.bf16.mxu0 0
        %884 = vmatpush1.bf16.msra.mxu0 0
        %885 = vmatprep.subr.bf16.mxu0 0
        %886 = vmatpush1.bf16.msra.mxu0 0
        %887 = vmatprep.subr.bf16.mxu0 0
        %888 = vmatpush1.bf16.msra.mxu0 0
        %889 = vmatprep.subr.bf16.mxu0 0
        %890 = vmatpush1.bf16.msra.mxu0 0
        %891 = vmatprep.subr.bf16.mxu0 0
        %892 = vmatpush1.bf16.msra.mxu0 0
        %893 = vmatprep.subr.bf16.mxu0 0
        %894 = vmatpush1.bf16.msra.mxu0 0
        %895 = vmatprep.subr.bf16.mxu0 0
        %896 = vmatpush1.bf16.msra.mxu0 0
        %897 = vmatprep.subr.bf16.mxu0 0
        %898 = vmatpush1.bf16.msra.mxu0 0
        %899 = vmatprep.subr.bf16.mxu0 0
        %900 = vmatpush1.bf16.msra.mxu0 0
        %901 = vmatprep.subr.bf16.mxu0 0
        %902 = vmatpush1.bf16.msra.mxu0 0
        %903 = vmatprep.subr.bf16.mxu0 0
        %904 = vmatpush1.bf16.msra.mxu0 0
        %905 = vmatprep.mubr.bf16.mxu0 0
        %906 = vmatmul.mubr.bf16.gmra.mrb[0].mxu0 %v871
        %v907 = vpop.f32.mrb[0].mxu0
        %v908 = vadd.f32 %v855, %v907
        %v909 = vpop.f32.mrb[0].mxu0
        %v910 = vpop.f32.mrb[0].mxu0
        %v911 = vadd.f32 %v855, %v910
        %v912 = vpop.f32.mrb[0].mxu0
        %913 = vdwg.mxu0
        %916 = vrot.lane.b32.xlu0 %v908, 112
        %v917 = vpop.permute.xlu0 %916
        %918 = vrot.lane.b32.xlu0 %v911, 112
        %v919 = vpop.permute.xlu0 %918
        %v922 = vpack.c.bf16 %v908, %v908
        %v923 = vpack.c.bf16 %v911, %v911
        %v924 = vpack.c.bf16 %v917, %v917
        %v925 = vpack.c.bf16 %v919, %v919
        %v926 = vld [vmem:[%s1] sm:$0x3]
        %v928 = vrot.slane %v926, 6
        %vm930 = vcmask 1041408
        %v931 = vsel %vm930, %v926, %v928
        %v934 = vunpack.c.l.s4 1966171168
        %v935 = vunpack.c.0.s8 %v934
        %v936 = vlaneseq
        %v937 = vshrl.u32 %v936, 7
        %v938 = vsub.s32 %v935, %v937
        %v939 = vrot.slane %v931, %v938
        %v940 = vcombine.high %v939, %v939
        %v942 = vunpack.c.l.s4 1966171168
        %v943 = vunpack.c.0.s8 %v942
        %v944 = vlaneseq
        %v945 = vshrl.u32 %v944, 7
        %v946 = vsub.s32 %v943, %v945
        %v947 = vrot.slane %v939, %v946
        %v949 = vunpack.c.l.s4 1966171168
        %v950 = vunpack.c.0.s8 %v949
        %v951 = vlaneseq
        %v952 = vshrl.u32 %v951, 7
        %v953 = vsub.s32 %v950, %v952
        %v954 = vrot.slane %v940, %v953
        %v955 = vcombine.high %v947, %v947
        %v956 = vcombine.high %v954, %v954
        %v957 = vlaneseq
        %v958 = vshrl.u32 %v957, 7
        %v959 = vsub.s32 0, %v958
        %v960 = vrot.slane %v947, %v959
        %v961 = vlaneseq
        %v962 = vshrl.u32 %v961, 7
        %v963 = vsub.s32 0, %v962
        %v964 = vrot.slane %v954, %v963
        %v965 = vlaneseq
        %v966 = vshrl.u32 %v965, 7
        %v967 = vsub.s32 0, %v966
        %v968 = vrot.slane %v955, %v967
        %v969 = vlaneseq
        %v970 = vshrl.u32 %v969, 7
        %v971 = vsub.s32 0, %v970
        %v972 = vrot.slane %v956, %v971
        %978 = vrot.lane.b32.xlu0 %v922, 96
        %v979 = vpop.permute.xlu0 %978
        %vm980 = vcmask 130048
        %v982 = vsel %vm980, %v922, 0
        %v985 = vsel %vm980, %v979, 0
        %987 = vmatprep.subr.bf16.mxu0 0
        %988 = vmatpush1.bf16.xpose.msra.mxu0 %v985
        %989 = vmatprep.subr.bf16.mxu0 0
        %990 = vmatpush1.bf16.xpose.msra.mxu0 0
        %991 = vmatprep.subr.bf16.mxu0 0
        %992 = vmatpush1.bf16.xpose.msra.mxu0 0
        %993 = vmatprep.subr.bf16.mxu0 0
        %994 = vmatpush1.bf16.xpose.msra.mxu0 0
        %995 = vmatprep.subr.bf16.mxu0 0
        %996 = vmatpush1.bf16.xpose.msra.mxu0 0
        %997 = vmatprep.subr.bf16.mxu0 0
        %998 = vmatpush1.bf16.xpose.msra.mxu0 0
        %999 = vmatprep.subr.bf16.mxu0 0
        %1000 = vmatpush1.bf16.xpose.msra.mxu0 0
        %1001 = vmatprep.subr.bf16.mxu0 0
        %1002 = vmatpush1.bf16.xpose.msra.mxu0 0
        %1003 = vmatprep.subr.bf16.mxu0 0
        %1004 = vmatpush1.bf16.xpose.msra.mxu0 0
        %1005 = vmatprep.subr.bf16.mxu0 0
        %1006 = vmatpush1.bf16.xpose.msra.mxu0 0
        %1007 = vmatprep.subr.bf16.mxu0 0
        %1008 = vmatpush1.bf16.xpose.msra.mxu0 0
        %1009 = vmatprep.subr.bf16.mxu0 0
        %1010 = vmatpush1.bf16.xpose.msra.mxu0 0
        %1011 = vmatprep.subr.bf16.mxu0 0
        %1012 = vmatpush1.bf16.xpose.msra.mxu0 0
        %1013 = vmatprep.subr.bf16.mxu0 0
        %1014 = vmatpush1.bf16.xpose.msra.mxu0 0
        %1015 = vmatprep.subr.bf16.mxu0 0
        %1016 = vmatpush1.bf16.xpose.msra.mxu0 0
        %1017 = vmatprep.subr.bf16.mxu0 0
        %1018 = vmatpush1.bf16.xpose.msra.mxu0 0
        %1019 = vmatprep.mubr.bf16.mxu0 0
        %1020 = vmatmul.mubr.bf16.gmra.mrb[0].mxu0 %v982
        %v1021 = vpop.f32.mrb[0].mxu0
        %v1022 = vadd.f32 %v960, %v1021
        %v1023 = vpop.f32.mrb[0].mxu0
        %v1024 = vpop.f32.mrb[0].mxu0
        %v1025 = vpop.f32.mrb[0].mxu0
        %1026 = vdwg.mxu0
        %1028 = vrot.lane.b32.xlu0 %v923, 96
        %v1029 = vpop.permute.xlu0 %1028
        %v1031 = vsel %vm980, %v923, 0
        %v1034 = vsel %vm980, %v1029, 0
        %1036 = vmatprep.subr.bf16.mxu0 0
        %1037 = vmatpush1.bf16.xpose.msra.mxu0 %v1034
        %1038 = vmatprep.subr.bf16.mxu0 0
        %1039 = vmatpush1.bf16.xpose.msra.mxu0 0
        %1040 = vmatprep.subr.bf16.mxu0 0
        %1041 = vmatpush1.bf16.xpose.msra.mxu0 0
        %1042 = vmatprep.subr.bf16.mxu0 0
        %1043 = vmatpush1.bf16.xpose.msra.mxu0 0
        %1044 = vmatprep.subr.bf16.mxu0 0
        %1045 = vmatpush1.bf16.xpose.msra.mxu0 0
        %1046 = vmatprep.subr.bf16.mxu0 0
        %1047 = vmatpush1.bf16.xpose.msra.mxu0 0
        %1048 = vmatprep.subr.bf16.mxu0 0
        %1049 = vmatpush1.bf16.xpose.msra.mxu0 0
        %1050 = vmatprep.subr.bf16.mxu0 0
        %1051 = vmatpush1.bf16.xpose.msra.mxu0 0
        %1052 = vmatprep.subr.bf16.mxu0 0
        %1053 = vmatpush1.bf16.xpose.msra.mxu0 0
        %1054 = vmatprep.subr.bf16.mxu0 0
        %1055 = vmatpush1.bf16.xpose.msra.mxu0 0
        %1056 = vmatprep.subr.bf16.mxu0 0
        %1057 = vmatpush1.bf16.xpose.msra.mxu0 0
        %1058 = vmatprep.subr.bf16.mxu0 0
        %1059 = vmatpush1.bf16.xpose.msra.mxu0 0
        %1060 = vmatprep.subr.bf16.mxu0 0
        %1061 = vmatpush1.bf16.xpose.msra.mxu0 0
        %1062 = vmatprep.subr.bf16.mxu0 0
        %1063 = vmatpush1.bf16.xpose.msra.mxu0 0
        %1064 = vmatprep.subr.bf16.mxu0 0
        %1065 = vmatpush1.bf16.xpose.msra.mxu0 0
        %1066 = vmatprep.subr.bf16.mxu0 0
        %1067 = vmatpush1.bf16.xpose.msra.mxu0 0
        %1068 = vmatprep.mubr.bf16.mxu0 0
        %1069 = vmatmul.mubr.bf16.gmra.mrb[0].mxu0 %v1031
        %v1070 = vpop.f32.mrb[0].mxu0
        %v1071 = vadd.f32 %v964, %v1070
        %v1072 = vpop.f32.mrb[0].mxu0
        %v1073 = vpop.f32.mrb[0].mxu0
        %v1074 = vpop.f32.mrb[0].mxu0
        %1075 = vdwg.mxu0
        %1077 = vrot.lane.b32.xlu0 %v924, 96
        %v1078 = vpop.permute.xlu0 %1077
        %v1080 = vsel %vm980, %v924, 0
        %v1083 = vsel %vm980, %v1078, 0
        %1085 = vmatprep.subr.bf16.mxu0 0
        %1086 = vmatpush1.bf16.xpose.msra.mxu0 %v1083
        %1087 = vmatprep.subr.bf16.mxu0 0
        %1088 = vmatpush1.bf16.xpose.msra.mxu0 0
        %1089 = vmatprep.subr.bf16.mxu0 0
        %1090 = vmatpush1.bf16.xpose.msra.mxu0 0
        %1091 = vmatprep.subr.bf16.mxu0 0
        %1092 = vmatpush1.bf16.xpose.msra.mxu0 0
        %1093 = vmatprep.subr.bf16.mxu0 0
        %1094 = vmatpush1.bf16.xpose.msra.mxu0 0
        %1095 = vmatprep.subr.bf16.mxu0 0
        %1096 = vmatpush1.bf16.xpose.msra.mxu0 0
        %1097 = vmatprep.subr.bf16.mxu0 0
        %1098 = vmatpush1.bf16.xpose.msra.mxu0 0
        %1099 = vmatprep.subr.bf16.mxu0 0
        %1100 = vmatpush1.bf16.xpose.msra.mxu0 0
        %1101 = vmatprep.subr.bf16.mxu0 0
        %1102 = vmatpush1.bf16.xpose.msra.mxu0 0
        %1103 = vmatprep.subr.bf16.mxu0 0
        %1104 = vmatpush1.bf16.xpose.msra.mxu0 0
        %1105 = vmatprep.subr.bf16.mxu0 0
        %1106 = vmatpush1.bf16.xpose.msra.mxu0 0
        %1107 = vmatprep.subr.bf16.mxu0 0
        %1108 = vmatpush1.bf16.xpose.msra.mxu0 0
        %1109 = vmatprep.subr.bf16.mxu0 0
        %1110 = vmatpush1.bf16.xpose.msra.mxu0 0
        %1111 = vmatprep.subr.bf16.mxu0 0
        %1112 = vmatpush1.bf16.xpose.msra.mxu0 0
        %1113 = vmatprep.subr.bf16.mxu0 0
        %1114 = vmatpush1.bf16.xpose.msra.mxu0 0
        %1115 = vmatprep.subr.bf16.mxu0 0
        %1116 = vmatpush1.bf16.xpose.msra.mxu0 0
        %1117 = vmatprep.mubr.bf16.mxu0 0
        %1118 = vmatmul.mubr.bf16.gmra.mrb[0].mxu0 %v1080
        %v1119 = vpop.f32.mrb[0].mxu0
        %v1120 = vadd.f32 %v968, %v1119
        %v1121 = vpop.f32.mrb[0].mxu0
        %v1122 = vpop.f32.mrb[0].mxu0
        %v1123 = vpop.f32.mrb[0].mxu0
        %1124 = vdwg.mxu0
        %1126 = vrot.lane.b32.xlu0 %v925, 96
        %v1127 = vpop.permute.xlu0 %1126
        %v1129 = vsel %vm980, %v925, 0
        %v1132 = vsel %vm980, %v1127, 0
        %1134 = vmatprep.subr.bf16.mxu0 0
        %1135 = vmatpush1.bf16.xpose.msra.mxu0 %v1132
        %1136 = vmatprep.subr.bf16.mxu0 0
        %1137 = vmatpush1.bf16.xpose.msra.mxu0 0
        %1138 = vmatprep.subr.bf16.mxu0 0
        %1139 = vmatpush1.bf16.xpose.msra.mxu0 0
        %1140 = vmatprep.subr.bf16.mxu0 0
        %1141 = vmatpush1.bf16.xpose.msra.mxu0 0
        %1142 = vmatprep.subr.bf16.mxu0 0
        %1143 = vmatpush1.bf16.xpose.msra.mxu0 0
        %1144 = vmatprep.subr.bf16.mxu0 0
        %1145 = vmatpush1.bf16.xpose.msra.mxu0 0
        %1146 = vmatprep.subr.bf16.mxu0 0
        %1147 = vmatpush1.bf16.xpose.msra.mxu0 0
        %1148 = vmatprep.subr.bf16.mxu0 0
        %1149 = vmatpush1.bf16.xpose.msra.mxu0 0
        %1150 = vmatprep.subr.bf16.mxu0 0
        %1151 = vmatpush1.bf16.xpose.msra.mxu0 0
        %1152 = vmatprep.subr.bf16.mxu0 0
        %1153 = vmatpush1.bf16.xpose.msra.mxu0 0
        %1154 = vmatprep.subr.bf16.mxu0 0
        %1155 = vmatpush1.bf16.xpose.msra.mxu0 0
        %1156 = vmatprep.subr.bf16.mxu0 0
        %1157 = vmatpush1.bf16.xpose.msra.mxu0 0
        %1158 = vmatprep.subr.bf16.mxu0 0
        %1159 = vmatpush1.bf16.xpose.msra.mxu0 0
        %1160 = vmatprep.subr.bf16.mxu0 0
        %1161 = vmatpush1.bf16.xpose.msra.mxu0 0
        %1162 = vmatprep.subr.bf16.mxu0 0
        %1163 = vmatpush1.bf16.xpose.msra.mxu0 0
        %1164 = vmatprep.subr.bf16.mxu0 0
        %1165 = vmatpush1.bf16.xpose.msra.mxu0 0
        %1166 = vmatprep.mubr.bf16.mxu0 0
        %1167 = vmatmul.mubr.bf16.gmra.mrb[0].mxu0 %v1129
        %v1168 = vpop.f32.mrb[0].mxu0
        %v1169 = vadd.f32 %v972, %v1168
        %v1170 = vpop.f32.mrb[0].mxu0
        %v1171 = vpop.f32.mrb[0].mxu0
        %v1172 = vpop.f32.mrb[0].mxu0
        %1173 = vdwg.mxu0
        %vm1174 = vcmask 64512
        %v1175 = vsel %vm1174, %v1022, -inf
        %1176 = vmax.xlane.f32.xlu0 %v1175
        %v1177 = vpop.xlane.xlu0 %1176
        %v1178 = vsel %vm1174, %v1071, -inf
        %1179 = vmax.xlane.f32.xlu0 %v1178
        %v1180 = vpop.xlane.xlu0 %1179
        %v1181 = vsel %vm1174, %v1120, -inf
        %1182 = vmax.xlane.f32.xlu0 %v1181
        %v1183 = vpop.xlane.xlu0 %1182
        %v1184 = vsel %vm1174, %v1169, -inf
        %1185 = vmax.xlane.f32.xlu0 %v1184
        %v1186 = vpop.xlane.xlu0 %1185
        %v1187 = vsub.f32 %v1022, %v1177
        %v1188 = vsub.f32 %v1071, %v1180
        %v1189 = vsub.f32 %v1120, %v1183
        %v1190 = vsub.f32 %v1169, %v1186
        %v1191 = vmul.f32 %v1187, 1.442695
        %v1192 = vpow.pop %v1191
        %v1193 = vmul.f32 %v1188, 1.442695
        %v1194 = vpow.pop %v1193
        %v1195 = vmul.f32 %v1189, 1.442695
        %v1196 = vpow.pop %v1195
        %v1197 = vmul.f32 %v1190, 1.442695
        %v1198 = vpow.pop %v1197
        %v1199 = vsel %vm1174, %v1192, 0.0
        %1200 = vadd.xlane.f32.xlu0 %v1199
        %v1201 = vpop.xlane.xlu0 %1200
        %v1202 = vsel %vm1174, %v1194, 0.0
        %1203 = vadd.xlane.f32.xlu0 %v1202
        %v1204 = vpop.xlane.xlu0 %1203
        %v1205 = vsel %vm1174, %v1196, 0.0
        %1206 = vadd.xlane.f32.xlu0 %v1205
        %v1207 = vpop.xlane.xlu0 %1206
        %v1208 = vsel %vm1174, %v1198, 0.0
        %1209 = vadd.xlane.f32.xlu0 %v1208
        %v1210 = vpop.xlane.xlu0 %1209
        %v1211 = vrcp.pop %v1201
        %v1212 = vrcp.pop %v1204
        %v1213 = vrcp.pop %v1207
        %v1214 = vrcp.pop %v1210
        %v1215 = vmul.f32 %v1192, %v1211
        %v1216 = vmul.f32 %v1194, %v1212
        %v1217 = vmul.f32 %v1196, %v1213
        %v1218 = vmul.f32 %v1198, %v1214
        %v1219 = vpack.c.bf16 %v1215, %v1215
        %v1220 = vpack.c.bf16 %v1216, %v1216
        %v1221 = vpack.c.bf16 %v1217, %v1217
        %v1222 = vpack.c.bf16 %v1218, %v1218
        %1223 = vrot.lane.b32.xlu0 %v922, 64
        %v1224 = vpop.permute.xlu0 %1223
        %v1226 = vsel %vm1174, %v1219, 0
        %vm1228 = vcmask 1043456
        %v1230 = vsel %vm1228, %v1224, 0
        %1232 = vmatprep.subr.bf16.mxu0 0
        %1233 = vmatpush1.bf16.msra.mxu0 %v1230
        %1234 = vmatprep.subr.bf16.mxu0 0
        %1235 = vmatpush1.bf16.msra.mxu0 0
        %1236 = vmatprep.subr.bf16.mxu0 0
        %1237 = vmatpush1.bf16.msra.mxu0 0
        %1238 = vmatprep.subr.bf16.mxu0 0
        %1239 = vmatpush1.bf16.msra.mxu0 0
        %1240 = vmatprep.subr.bf16.mxu0 0
        %1241 = vmatpush1.bf16.msra.mxu0 0
        %1242 = vmatprep.subr.bf16.mxu0 0
        %1243 = vmatpush1.bf16.msra.mxu0 0
        %1244 = vmatprep.subr.bf16.mxu0 0
        %1245 = vmatpush1.bf16.msra.mxu0 0
        %1246 = vmatprep.subr.bf16.mxu0 0
        %1247 = vmatpush1.bf16.msra.mxu0 0
        %1248 = vmatprep.subr.bf16.mxu0 0
        %1249 = vmatpush1.bf16.msra.mxu0 0
        %1250 = vmatprep.subr.bf16.mxu0 0
        %1251 = vmatpush1.bf16.msra.mxu0 0
        %1252 = vmatprep.subr.bf16.mxu0 0
        %1253 = vmatpush1.bf16.msra.mxu0 0
        %1254 = vmatprep.subr.bf16.mxu0 0
        %1255 = vmatpush1.bf16.msra.mxu0 0
        %1256 = vmatprep.subr.bf16.mxu0 0
        %1257 = vmatpush1.bf16.msra.mxu0 0
        %1258 = vmatprep.subr.bf16.mxu0 0
        %1259 = vmatpush1.bf16.msra.mxu0 0
        %1260 = vmatprep.subr.bf16.mxu0 0
        %1261 = vmatpush1.bf16.msra.mxu0 0
        %1262 = vmatprep.subr.bf16.mxu0 0
        %1263 = vmatpush1.bf16.msra.mxu0 0
        %1264 = vmatprep.mubr.bf16.mxu0 0
        %1265 = vmatmul.mubr.bf16.gmra.mrb[0].mxu0 %v1226
        %v1266 = vpop.f32.mrb[0].mxu0
        %v1267 = vadd.f32 0.0, %v1266
        %v1268 = vpop.f32.mrb[0].mxu0
        %v1269 = vpop.f32.mrb[0].mxu0
        %v1270 = vpop.f32.mrb[0].mxu0
        %1271 = vdwg.mxu0
        %1272 = vrot.lane.b32.xlu0 %v923, 64
        %v1273 = vpop.permute.xlu0 %1272
        %v1275 = vsel %vm1174, %v1220, 0
        %v1278 = vsel %vm1228, %v1273, 0
        %1280 = vmatprep.subr.bf16.mxu0 0
        %1281 = vmatpush1.bf16.msra.mxu0 %v1278
        %1282 = vmatprep.subr.bf16.mxu0 0
        %1283 = vmatpush1.bf16.msra.mxu0 0
        %1284 = vmatprep.subr.bf16.mxu0 0
        %1285 = vmatpush1.bf16.msra.mxu0 0
        %1286 = vmatprep.subr.bf16.mxu0 0
        %1287 = vmatpush1.bf16.msra.mxu0 0
        %1288 = vmatprep.subr.bf16.mxu0 0
        %1289 = vmatpush1.bf16.msra.mxu0 0
        %1290 = vmatprep.subr.bf16.mxu0 0
        %1291 = vmatpush1.bf16.msra.mxu0 0
        %1292 = vmatprep.subr.bf16.mxu0 0
        %1293 = vmatpush1.bf16.msra.mxu0 0
        %1294 = vmatprep.subr.bf16.mxu0 0
        %1295 = vmatpush1.bf16.msra.mxu0 0
        %1296 = vmatprep.subr.bf16.mxu0 0
        %1297 = vmatpush1.bf16.msra.mxu0 0
        %1298 = vmatprep.subr.bf16.mxu0 0
        %1299 = vmatpush1.bf16.msra.mxu0 0
        %1300 = vmatprep.subr.bf16.mxu0 0
        %1301 = vmatpush1.bf16.msra.mxu0 0
        %1302 = vmatprep.subr.bf16.mxu0 0
        %1303 = vmatpush1.bf16.msra.mxu0 0
        %1304 = vmatprep.subr.bf16.mxu0 0
        %1305 = vmatpush1.bf16.msra.mxu0 0
        %1306 = vmatprep.subr.bf16.mxu0 0
        %1307 = vmatpush1.bf16.msra.mxu0 0
        %1308 = vmatprep.subr.bf16.mxu0 0
        %1309 = vmatpush1.bf16.msra.mxu0 0
        %1310 = vmatprep.subr.bf16.mxu0 0
        %1311 = vmatpush1.bf16.msra.mxu0 0
        %1312 = vmatprep.mubr.bf16.mxu0 0
        %1313 = vmatmul.mubr.bf16.gmra.mrb[0].mxu0 %v1275
        %v1314 = vpop.f32.mrb[0].mxu0
        %v1315 = vadd.f32 0.0, %v1314
        %v1316 = vpop.f32.mrb[0].mxu0
        %v1317 = vpop.f32.mrb[0].mxu0
        %v1318 = vpop.f32.mrb[0].mxu0
        %1319 = vdwg.mxu0
        %1320 = vrot.lane.b32.xlu0 %v924, 64
        %v1321 = vpop.permute.xlu0 %1320
        %v1323 = vsel %vm1174, %v1221, 0
        %v1326 = vsel %vm1228, %v1321, 0
        %1328 = vmatprep.subr.bf16.mxu0 0
        %1329 = vmatpush1.bf16.msra.mxu0 %v1326
        %1330 = vmatprep.subr.bf16.mxu0 0
        %1331 = vmatpush1.bf16.msra.mxu0 0
        %1332 = vmatprep.subr.bf16.mxu0 0
        %1333 = vmatpush1.bf16.msra.mxu0 0
        %1334 = vmatprep.subr.bf16.mxu0 0
        %1335 = vmatpush1.bf16.msra.mxu0 0
        %1336 = vmatprep.subr.bf16.mxu0 0
        %1337 = vmatpush1.bf16.msra.mxu0 0
        %1338 = vmatprep.subr.bf16.mxu0 0
        %1339 = vmatpush1.bf16.msra.mxu0 0
        %1340 = vmatprep.subr.bf16.mxu0 0
        %1341 = vmatpush1.bf16.msra.mxu0 0
        %1342 = vmatprep.subr.bf16.mxu0 0
        %1343 = vmatpush1.bf16.msra.mxu0 0
        %1344 = vmatprep.subr.bf16.mxu0 0
        %1345 = vmatpush1.bf16.msra.mxu0 0
        %1346 = vmatprep.subr.bf16.mxu0 0
        %1347 = vmatpush1.bf16.msra.mxu0 0
        %1348 = vmatprep.subr.bf16.mxu0 0
        %1349 = vmatpush1.bf16.msra.mxu0 0
        %1350 = vmatprep.subr.bf16.mxu0 0
        %1351 = vmatpush1.bf16.msra.mxu0 0
        %1352 = vmatprep.subr.bf16.mxu0 0
        %1353 = vmatpush1.bf16.msra.mxu0 0
        %1354 = vmatprep.subr.bf16.mxu0 0
        %1355 = vmatpush1.bf16.msra.mxu0 0
        %1356 = vmatprep.subr.bf16.mxu0 0
        %1357 = vmatpush1.bf16.msra.mxu0 0
        %1358 = vmatprep.subr.bf16.mxu0 0
        %1359 = vmatpush1.bf16.msra.mxu0 0
        %1360 = vmatprep.mubr.bf16.mxu0 0
        %1361 = vmatmul.mubr.bf16.gmra.mrb[0].mxu0 %v1323
        %v1362 = vpop.f32.mrb[0].mxu0
        %v1363 = vadd.f32 0.0, %v1362
        %v1364 = vpop.f32.mrb[0].mxu0
        %v1365 = vpop.f32.mrb[0].mxu0
        %v1366 = vpop.f32.mrb[0].mxu0
        %1367 = vdwg.mxu0
        %1368 = vrot.lane.b32.xlu0 %v925, 64
        %v1369 = vpop.permute.xlu0 %1368
        %v1371 = vsel %vm1174, %v1222, 0
        %v1374 = vsel %vm1228, %v1369, 0
        %1376 = vmatprep.subr.bf16.mxu0 0
        %1377 = vmatpush1.bf16.msra.mxu0 %v1374
        %1378 = vmatprep.subr.bf16.mxu0 0
        %1379 = vmatpush1.bf16.msra.mxu0 0
        %1380 = vmatprep.subr.bf16.mxu0 0
        %1381 = vmatpush1.bf16.msra.mxu0 0
        %1382 = vmatprep.subr.bf16.mxu0 0
        %1383 = vmatpush1.bf16.msra.mxu0 0
        %1384 = vmatprep.subr.bf16.mxu0 0
        %1385 = vmatpush1.bf16.msra.mxu0 0
        %1386 = vmatprep.subr.bf16.mxu0 0
        %1387 = vmatpush1.bf16.msra.mxu0 0
        %1388 = vmatprep.subr.bf16.mxu0 0
        %1389 = vmatpush1.bf16.msra.mxu0 0
        %1390 = vmatprep.subr.bf16.mxu0 0
        %1391 = vmatpush1.bf16.msra.mxu0 0
        %1392 = vmatprep.subr.bf16.mxu0 0
        %1393 = vmatpush1.bf16.msra.mxu0 0
        %1394 = vmatprep.subr.bf16.mxu0 0
        %1395 = vmatpush1.bf16.msra.mxu0 0
        %1396 = vmatprep.subr.bf16.mxu0 0
        %1397 = vmatpush1.bf16.msra.mxu0 0
        %1398 = vmatprep.subr.bf16.mxu0 0
        %1399 = vmatpush1.bf16.msra.mxu0 0
        %1400 = vmatprep.subr.bf16.mxu0 0
        %1401 = vmatpush1.bf16.msra.mxu0 0
        %1402 = vmatprep.subr.bf16.mxu0 0
        %1403 = vmatpush1.bf16.msra.mxu0 0
        %1404 = vmatprep.subr.bf16.mxu0 0
        %1405 = vmatpush1.bf16.msra.mxu0 0
        %1406 = vmatprep.subr.bf16.mxu0 0
        %1407 = vmatpush1.bf16.msra.mxu0 0
        %1408 = vmatprep.mubr.bf16.mxu0 0
        %1409 = vmatmul.mubr.bf16.gmra.mrb[0].mxu0 %v1371
        %v1410 = vpop.f32.mrb[0].mxu0
        %v1411 = vadd.f32 0.0, %v1410
        %v1412 = vpop.f32.mrb[0].mxu0
        %v1413 = vpop.f32.mrb[0].mxu0
        %v1414 = vpop.f32.mrb[0].mxu0
        %1415 = vdwg.mxu0
        %1418 = vrot.lane.b32.xlu0 %v1363, 16
        %v1419 = vpop.permute.xlu0 %1418
        %1420 = vrot.lane.b32.xlu0 %v1411, 16
        %v1421 = vpop.permute.xlu0 %1420
        %v1424 = vsel %vm980, %v1267, %v1419
        %v1425 = vsel %vm980, %v1315, %v1421
        %v1426 = vpack.c.bf16 %v1425, %v1424
        %v1427 = vld [vmem:[%s756] sm:$0xf]
        %v1428 = vld [vmem:[%s756 + $0x4] sm:$0xf]
        %v1429 = vld [vmem:[%s756 + $0x8] sm:$0xf]
        %v1430 = vld [vmem:[%s756 + $0xc] sm:$0xf]
        %v1431 = vld [vmem:[%s759] sm:$0x1]
        %v1433 = vlaneseq
        %v1434 = vshrl.u32 %v1433, 7
        %v1435 = vsub.s32 0, %v1434
        %v1436 = vrot.slane %v1431, %v1435
        %v1442 = vunpack.c.l.b16 %v1427
        %v1443 = vunpack.c.l.b16 %v1428
        %v1444 = vunpack.c.l.b16 %v1429
        %v1445 = vunpack.c.l.b16 %v1430
        %v1446 = vpack.c.b16 %v1443, %v1442
        %v1447 = vpack.c.b16 %v1445, %v1444
        %v1451 = vsel %vm869, %v1426, 0
        %1453 = vmatprep.subr.bf16.mxu0 0
        %1454 = vmatpush1.bf16.msra.mxu0 %v1446
        %1455 = vmatprep.subr.bf16.mxu0 0
        %1456 = vmatpush1.bf16.msra.mxu0 %v1447
        %1457 = vmatprep.subr.bf16.mxu0 0
        %1458 = vmatpush1.bf16.msra.mxu0 0
        %1459 = vmatprep.subr.bf16.mxu0 0
        %1460 = vmatpush1.bf16.msra.mxu0 0
        %1461 = vmatprep.subr.bf16.mxu0 0
        %1462 = vmatpush1.bf16.msra.mxu0 0
        %1463 = vmatprep.subr.bf16.mxu0 0
        %1464 = vmatpush1.bf16.msra.mxu0 0
        %1465 = vmatprep.subr.bf16.mxu0 0
        %1466 = vmatpush1.bf16.msra.mxu0 0
        %1467 = vmatprep.subr.bf16.mxu0 0
        %1468 = vmatpush1.bf16.msra.mxu0 0
        %1469 = vmatprep.subr.bf16.mxu0 0
        %1470 = vmatpush1.bf16.msra.mxu0 0
        %1471 = vmatprep.subr.bf16.mxu0 0
        %1472 = vmatpush1.bf16.msra.mxu0 0
        %1473 = vmatprep.subr.bf16.mxu0 0
        %1474 = vmatpush1.bf16.msra.mxu0 0
        %1475 = vmatprep.subr.bf16.mxu0 0
        %1476 = vmatpush1.bf16.msra.mxu0 0
        %1477 = vmatprep.subr.bf16.mxu0 0
        %1478 = vmatpush1.bf16.msra.mxu0 0
        %1479 = vmatprep.subr.bf16.mxu0 0
        %1480 = vmatpush1.bf16.msra.mxu0 0
        %1481 = vmatprep.subr.bf16.mxu0 0
        %1482 = vmatpush1.bf16.msra.mxu0 0
        %1483 = vmatprep.subr.bf16.mxu0 0
        %1484 = vmatpush1.bf16.msra.mxu0 0
        %1485 = vmatprep.mubr.bf16.mxu0 0
        %1486 = vmatmul.mubr.bf16.gmra.mrb[0].mxu0 %v1451
        %v1487 = vpop.f32.mrb[0].mxu0
        %v1488 = vadd.f32 %v1436, %v1487
        %v1489 = vpop.f32.mrb[0].mxu0
        %v1490 = vpop.f32.mrb[0].mxu0
        %v1491 = vadd.f32 %v1436, %v1490
        %v1492 = vpop.f32.mrb[0].mxu0
        %1493 = vdwg.mxu0
        %v1494 = vadd.f32 %v1488, %v843
        %v1495 = vadd.f32 %v1491, %v844
        %v1496 = vld [vmem:[%s762] sm:$0x1]
        %v1497 = vld [vmem:[%s765] sm:$0x1]
        %v1498 = vsel %vm869, %v1494, 0.0
        %1499 = vadd.xlane.f32.xlu0 %v1498
        %v1500 = vpop.xlane.xlu0 %1499
        %v1501 = vsel %vm869, %v1495, 0.0
        %1502 = vadd.xlane.f32.xlu0 %v1501
        %v1503 = vpop.xlane.xlu0 %1502
        %v1504 = vrcp.pop 32.0
        %v1505 = vmul.f32 %v1500, %v1504
        %v1506 = vmul.f32 %v1503, %v1504
        %v1507 = vsub.f32 %v1494, %v1505
        %v1508 = vsub.f32 %v1495, %v1506
        %v1509 = vmul.f32 %v1507, %v1507
        %v1510 = vmul.f32 %v1508, %v1508
        %v1511 = vsel %vm869, %v1509, 0.0
        %1512 = vadd.xlane.f32.xlu0 %v1511
        %v1513 = vpop.xlane.xlu0 %1512
        %v1514 = vsel %vm869, %v1510, 0.0
        %1515 = vadd.xlane.f32.xlu0 %v1514
        %v1516 = vpop.xlane.xlu0 %1515
        %v1517 = vmul.f32 %v1513, %v1504
        %v1518 = vmul.f32 %v1516, %v1504
        %v1519 = vadd.f32 %v1517, 1e-12
        %v1520 = vadd.f32 %v1518, 1e-12
        %v1521 = vrsqrt.pop %v1519
        %v1522 = vrsqrt.pop %v1520
        %v1523 = vmul.f32 %v1507, %v1521
        %v1524 = vmul.f32 %v1508, %v1522
        %v1526 = vlaneseq
        %v1527 = vshrl.u32 %v1526, 7
        %v1528 = vsub.s32 0, %v1527
        %v1529 = vrot.slane %v1496, %v1528
        %v1531 = vmul.f32 %v1523, %v1529
        %v1532 = vmul.f32 %v1524, %v1529
        %v1534 = vlaneseq
        %v1535 = vshrl.u32 %v1534, 7
        %v1536 = vsub.s32 0, %v1535
        %v1537 = vrot.slane %v1497, %v1536
        %v1539 = vadd.f32 %v1531, %v1537
        %v1540 = vadd.f32 %v1532, %v1537
        %v1541 = vpack.c.bf16 %v1540, %v1539
        %v1542 = vld [vmem:[%s770] sm:$0xf]
        %v1543 = vld [vmem:[%s770 + $0x4] sm:$0xf]
        %v1544 = vld [vmem:[%s770 + $0x8] sm:$0xf]
        %v1545 = vld [vmem:[%s770 + $0xc] sm:$0xf]
        %v1546 = vld [vmem:[%s773] sm:$0x1]
        %v1548 = vlaneseq
        %v1549 = vshrl.u32 %v1548, 7
        %v1550 = vsub.s32 0, %v1549
        %v1551 = vrot.slane %v1546, %v1550
        %v1557 = vunpack.c.l.b16 %v1542
        %v1558 = vunpack.c.l.b16 %v1543
        %v1559 = vunpack.c.l.b16 %v1544
        %v1560 = vunpack.c.l.b16 %v1545
        %v1561 = vpack.c.b16 %v1558, %v1557
        %v1562 = vpack.c.b16 %v1560, %v1559
        %v1566 = vsel %vm869, %v1541, 0
        %1568 = vmatprep.subr.bf16.mxu0 0
        %1569 = vmatpush1.bf16.msra.mxu0 %v1561
        %1570 = vmatprep.subr.bf16.mxu0 0
        %1571 = vmatpush1.bf16.msra.mxu0 %v1562
        %1572 = vmatprep.subr.bf16.mxu0 0
        %1573 = vmatpush1.bf16.msra.mxu0 0
        %1574 = vmatprep.subr.bf16.mxu0 0
        %1575 = vmatpush1.bf16.msra.mxu0 0
        %1576 = vmatprep.subr.bf16.mxu0 0
        %1577 = vmatpush1.bf16.msra.mxu0 0
        %1578 = vmatprep.subr.bf16.mxu0 0
        %1579 = vmatpush1.bf16.msra.mxu0 0
        %1580 = vmatprep.subr.bf16.mxu0 0
        %1581 = vmatpush1.bf16.msra.mxu0 0
        %1582 = vmatprep.subr.bf16.mxu0 0
        %1583 = vmatpush1.bf16.msra.mxu0 0
        %1584 = vmatprep.subr.bf16.mxu0 0
        %1585 = vmatpush1.bf16.msra.mxu0 0
        %1586 = vmatprep.subr.bf16.mxu0 0
        %1587 = vmatpush1.bf16.msra.mxu0 0
        %1588 = vmatprep.subr.bf16.mxu0 0
        %1589 = vmatpush1.bf16.msra.mxu0 0
        %1590 = vmatprep.subr.bf16.mxu0 0
        %1591 = vmatpush1.bf16.msra.mxu0 0
        %1592 = vmatprep.subr.bf16.mxu0 0
        %1593 = vmatpush1.bf16.msra.mxu0 0
        %1594 = vmatprep.subr.bf16.mxu0 0
        %1595 = vmatpush1.bf16.msra.mxu0 0
        %1596 = vmatprep.subr.bf16.mxu0 0
        %1597 = vmatpush1.bf16.msra.mxu0 0
        %1598 = vmatprep.subr.bf16.mxu0 0
        %1599 = vmatpush1.bf16.msra.mxu0 0
        %1600 = vmatprep.mubr.bf16.mxu0 0
        %1601 = vmatmul.mubr.bf16.gmra.mrb[0].mxu0 %v1566
        %v1602 = vpop.f32.mrb[0].mxu0
        %v1603 = vadd.f32 %v1551, %v1602
        %v1604 = vpop.f32.mrb[0].mxu0
        %v1605 = vpop.f32.mrb[0].mxu0
        %v1606 = vadd.f32 %v1551, %v1605
        %v1607 = vpop.f32.mrb[0].mxu0
        %1608 = vdwg.mxu0
        %v1609 = vmul.f32 %v1603, %v1603
        %v1610 = vmul.f32 %v1606, %v1606
        %v1611 = vmul.f32 %v1603, %v1609
        %v1612 = vmul.f32 %v1606, %v1610
        %v1613 = vmul.f32 %v1611, 0.044715
        %v1614 = vmul.f32 %v1612, 0.044715
        %v1615 = vadd.f32 %v1603, %v1613
        %v1616 = vadd.f32 %v1606, %v1614
        %v1617 = vmul.f32 %v1615, 0.7978846
        %v1618 = vmul.f32 %v1616, 0.7978846
        %v1619 = vtanh.pop %v1617
        %v1620 = vtanh.pop %v1618
        %v1621 = vadd.f32 %v1619, 1.0
        %v1622 = vadd.f32 %v1620, 1.0
        %v1623 = vmul.f32 %v1621, 0.5
        %v1624 = vmul.f32 %v1622, 0.5
        %v1625 = vmul.f32 %v1603, %v1623
        %v1626 = vmul.f32 %v1606, %v1624
        %v1627 = vpack.c.bf16 %v1626, %v1625
        %v1628 = vld [vmem:[%s778] sm:$0xf]
        %v1629 = vld [vmem:[%s778 + $0x4] sm:$0xf]
        %v1630 = vld [vmem:[%s778 + $0x8] sm:$0xf]
        %v1631 = vld [vmem:[%s778 + $0xc] sm:$0xf]
        %v1632 = vld [vmem:[%s778 + $0x10] sm:$0xf]
        %v1633 = vld [vmem:[%s778 + $0x14] sm:$0xf]
        %v1634 = vld [vmem:[%s778 + $0x18] sm:$0xf]
        %v1635 = vld [vmem:[%s778 + $0x1c] sm:$0xf]
        %v1636 = vld [vmem:[%s781] sm:$0x1]
        %v1638 = vlaneseq
        %v1639 = vshrl.u32 %v1638, 7
        %v1640 = vsub.s32 0, %v1639
        %v1641 = vrot.slane %v1636, %v1640
        %v1651 = vunpack.c.l.b16 %v1628
        %v1652 = vunpack.c.l.b16 %v1629
        %v1653 = vunpack.c.l.b16 %v1630
        %v1654 = vunpack.c.l.b16 %v1631
        %v1655 = vunpack.c.l.b16 %v1632
        %v1656 = vunpack.c.l.b16 %v1633
        %v1657 = vunpack.c.l.b16 %v1634
        %v1658 = vunpack.c.l.b16 %v1635
        %v1659 = vpack.c.b16 %v1652, %v1651
        %v1660 = vpack.c.b16 %v1654, %v1653
        %v1661 = vpack.c.b16 %v1656, %v1655
        %v1662 = vpack.c.b16 %v1658, %v1657
        %vm1667 = vcmask 523264
        %v1669 = vsel %vm1667, %v1627, 0
        %1671 = vmatprep.subr.bf16.mxu0 0
        %1672 = vmatpush1.bf16.msra.mxu0 %v1659
        %1673 = vmatprep.subr.bf16.mxu0 0
        %1674 = vmatpush1.bf16.msra.mxu0 %v1660
        %1675 = vmatprep.subr.bf16.mxu0 0
        %1676 = vmatpush1.bf16.msra.mxu0 %v1661
        %1677 = vmatprep.subr.bf16.mxu0 0
        %1678 = vmatpush1.bf16.msra.mxu0 %v1662
        %1679 = vmatprep.subr.bf16.mxu0 0
        %1680 = vmatpush1.bf16.msra.mxu0 0
        %1681 = vmatprep.subr.bf16.mxu0 0
        %1682 = vmatpush1.bf16.msra.mxu0 0
        %1683 = vmatprep.subr.bf16.mxu0 0
        %1684 = vmatpush1.bf16.msra.mxu0 0
        %1685 = vmatprep.subr.bf16.mxu0 0
        %1686 = vmatpush1.bf16.msra.mxu0 0
        %1687 = vmatprep.subr.bf16.mxu0 0
        %1688 = vmatpush1.bf16.msra.mxu0 0
        %1689 = vmatprep.subr.bf16.mxu0 0
        %1690 = vmatpush1.bf16.msra.mxu0 0
        %1691 = vmatprep.subr.bf16.mxu0 0
        %1692 = vmatpush1.bf16.msra.mxu0 0
        %1693 = vmatprep.subr.bf16.mxu0 0
        %1694 = vmatpush1.bf16.msra.mxu0 0
        %1695 = vmatprep.subr.bf16.mxu0 0
        %1696 = vmatpush1.bf16.msra.mxu0 0
        %1697 = vmatprep.subr.bf16.mxu0 0
        %1698 = vmatpush1.bf16.msra.mxu0 0
        %1699 = vmatprep.subr.bf16.mxu0 0
        %1700 = vmatpush1.bf16.msra.mxu0 0
        %1701 = vmatprep.subr.bf16.mxu0 0
        %1702 = vmatpush1.bf16.msra.mxu0 0
        %1703 = vmatprep.mubr.bf16.mxu0 0
        %1704 = vmatmul.mubr.bf16.gmra.mrb[0].mxu0 %v1669
        %v1705 = vpop.f32.mrb[0].mxu0
        %v1706 = vadd.f32 %v1641, %v1705
        %v1707 = vpop.f32.mrb[0].mxu0
        %v1708 = vpop.f32.mrb[0].mxu0
        %v1709 = vadd.f32 %v1641, %v1708
        %v1710 = vpop.f32.mrb[0].mxu0
        %1711 = vdwg.mxu0
        %v1712 = vadd.f32 %v1706, %v1539
        %v1713 = vadd.f32 %v1709, %v1540
        %v1714 = vld [vmem:[%s784] sm:$0x1]
        %v1715 = vld [vmem:[%s787] sm:$0x1]
        %v1716 = vsel %vm869, %v1712, 0.0
        %1717 = vadd.xlane.f32.xlu0 %v1716
        %v1718 = vpop.xlane.xlu0 %1717
        %v1719 = vsel %vm869, %v1713, 0.0
        %1720 = vadd.xlane.f32.xlu0 %v1719
        %v1721 = vpop.xlane.xlu0 %1720
        %v1722 = vmul.f32 %v1718, %v1504
        %v1723 = vmul.f32 %v1721, %v1504
        %v1724 = vsub.f32 %v1712, %v1722
        %v1725 = vsub.f32 %v1713, %v1723
        %v1726 = vmul.f32 %v1724, %v1724
        %v1727 = vmul.f32 %v1725, %v1725
        %v1728 = vsel %vm869, %v1726, 0.0
        %1729 = vadd.xlane.f32.xlu0 %v1728
        %v1730 = vpop.xlane.xlu0 %1729
        %v1731 = vsel %vm869, %v1727, 0.0
        %1732 = vadd.xlane.f32.xlu0 %v1731
        %v1733 = vpop.xlane.xlu0 %1732
        %v1734 = vmul.f32 %v1730, %v1504
        %v1735 = vmul.f32 %v1733, %v1504
        %v1736 = vadd.f32 %v1734, 1e-12
        %v1737 = vadd.f32 %v1735, 1e-12
        %v1738 = vrsqrt.pop %v1736
        %v1739 = vrsqrt.pop %v1737
        %v1740 = vmul.f32 %v1724, %v1738
        %v1741 = vmul.f32 %v1725, %v1739
        %v1743 = vlaneseq
        %v1744 = vshrl.u32 %v1743, 7
        %v1745 = vsub.s32 0, %v1744
        %v1746 = vrot.slane %v1714, %v1745
        %v1748 = vmul.f32 %v1740, %v1746
        %v1749 = vmul.f32 %v1741, %v1746
        %v1751 = vlaneseq
        %v1752 = vshrl.u32 %v1751, 7
        %v1753 = vsub.s32 0, %v1752
        %v1754 = vrot.slane %v1715, %v1753
        %v1756 = vadd.f32 %v1748, %v1754
        %v1757 = vadd.f32 %v1749, %v1754
        %1758 = vst.msk [vmem:[#allocation2] sm:$0xff] %vm869, %v1756
        %1759 = vst.msk [vmem:[#allocation2 + $0x8] sm:$0xff] %vm869, %v1757
        %p1760 = scmp.eq.s32.totalorder %s32, 1
        // Predicated region
        $region105: #{bert_multilabel_forward.1} parent=99 // pred_check
          %p1761 = pneg %p1760
        $region106: #{bert_multilabel_forward.1} parent=99 // pred_check_branch
          %1763 = sbr.rel (%p1761) target = $region108
        $region107: #{bert_multilabel_forward.1} parent=99 // pred_region
          %v1765 = vrot.slane %v1757, 7
          %vm1767 = vcmask 1040384
          %v1768 = vsel %vm1767, %v1756, %v1765
          %v1769 = vpack.c.bf16 %v1768, %v1768
          %v1770 = vld [vmem:[%s16] sm:$0xf]
          %v1771 = vld [vmem:[%s16 + $0x4] sm:$0xf]
          %v1772 = vld [vmem:[%s16 + $0x8] sm:$0xf]
          %v1773 = vld [vmem:[%s16 + $0xc] sm:$0xf]
          %v1774 = vld [vmem:[%s17] sm:$0x1]
          %v1776 = vlaneseq
          %v1777 = vshrl.u32 %v1776, 7
          %v1778 = vsub.s32 0, %v1777
          %v1779 = vrot.slane %v1774, %v1778
          %v1785 = vunpack.c.l.b16 %v1770
          %v1786 = vunpack.c.l.b16 %v1771
          %v1787 = vunpack.c.l.b16 %v1772
          %v1788 = vunpack.c.l.b16 %v1773
          %v1789 = vpack.c.b16 %v1786, %v1785
          %v1790 = vpack.c.b16 %v1788, %v1787
          %v1794 = vsel %vm869, %v1769, 0
          %1796 = vmatprep.subr.bf16.mxu0 0
          %1797 = vmatpush1.bf16.msra.mxu0 %v1789
          %1798 = vmatprep.subr.bf16.mxu0 0
          %1799 = vmatpush1.bf16.msra.mxu0 %v1790
          %1800 = vmatprep.subr.bf16.mxu0 0
          %1801 = vmatpush1.bf16.msra.mxu0 0
          %1802 = vmatprep.subr.bf16.mxu0 0
          %1803 = vmatpush1.bf16.msra.mxu0 0
          %1804 = vmatprep.subr.bf16.mxu0 0
          %1805 = vmatpush1.bf16.msra.mxu0 0
          %1806 = vmatprep.subr.bf16.mxu0 0
          %1807 = vmatpush1.bf16.msra.mxu0 0
          %1808 = vmatprep.subr.bf16.mxu0 0
          %1809 = vmatpush1.bf16.msra.mxu0 0
          %1810 = vmatprep.subr.bf16.mxu0 0
          %1811 = vmatpush1.bf16.msra.mxu0 0
          %1812 = vmatprep.subr.bf16.mxu0 0
          %1813 = vmatpush1.bf16.msra.mxu0 0
          %1814 = vmatprep.subr.bf16.mxu0 0
          %1815 = vmatpush1.bf16.msra.mxu0 0
          %1816 = vmatprep.subr.bf16.mxu0 0
          %1817 = vmatpush1.bf16.msra.mxu0 0
          %1818 = vmatprep.subr.bf16.mxu0 0
          %1819 = vmatpush1.bf16.msra.mxu0 0
          %1820 = vmatprep.subr.bf16.mxu0 0
          %1821 = vmatpush1.bf16.msra.mxu0 0
          %1822 = vmatprep.subr.bf16.mxu0 0
          %1823 = vmatpush1.bf16.msra.mxu0 0
          %1824 = vmatprep.subr.bf16.mxu0 0
          %1825 = vmatpush1.bf16.msra.mxu0 0
          %1826 = vmatprep.subr.bf16.mxu0 0
          %1827 = vmatpush1.bf16.msra.mxu0 0
          %1828 = vmatprep.mubr.bf16.mxu0 0
          %1829 = vmatmul.mubr.bf16.gmra.mrb[0].mxu0 %v1794
          %v1830 = vpop.f32.mrb[0].mxu0
          %v1831 = vadd.f32 %v1779, %v1830
          %v1832 = vpop.f32.mrb[0].mxu0
          %v1833 = vpop.f32.mrb[0].mxu0
          %v1834 = vpop.f32.mrb[0].mxu0
          %1835 = vdwg.mxu0
          %v1836 = vtanh.pop %v1831
          %v1837 = vpack.c.bf16 %v1836, %v1836
          %v1838 = vld [vmem:[%s18] sm:$0xf]
          %v1839 = vld [vmem:[%s18 + $0x4] sm:$0xf]
          %v1840 = vld [vmem:[%s18 + $0x8] sm:$0xf]
          %v1841 = vld [vmem:[%s18 + $0xc] sm:$0xf]
          %v1842 = vld [vmem:[%s19] sm:$0x1]
          %v1844 = vlaneseq
          %v1845 = vshrl.u32 %v1844, 7
          %v1846 = vsub.s32 0, %v1845
          %v1847 = vrot.slane %v1842, %v1846
          %v1853 = vunpack.c.l.b16 %v1838
          %v1854 = vunpack.c.l.b16 %v1839
          %v1855 = vunpack.c.l.b16 %v1840
          %v1856 = vunpack.c.l.b16 %v1841
          %v1857 = vpack.c.b16 %v1854, %v1853
          %v1858 = vpack.c.b16 %v1856, %v1855
          %v1862 = vsel %vm869, %v1837, 0
          %1864 = vmatprep.subr.bf16.mxu0 0
          %1865 = vmatpush1.bf16.msra.mxu0 %v1857
          %1866 = vmatprep.subr.bf16.mxu0 0
          %1867 = vmatpush1.bf16.msra.mxu0 %v1858
          %1868 = vmatprep.subr.bf16.mxu0 0
          %1869 = vmatpush1.bf16.msra.mxu0 0
          %1870 = vmatprep.subr.bf16.mxu0 0
          %1871 = vmatpush1.bf16.msra.mxu0 0
          %1872 = vmatprep.subr.bf16.mxu0 0
          %1873 = vmatpush1.bf16.msra.mxu0 0
          %1874 = vmatprep.subr.bf16.mxu0 0
          %1875 = vmatpush1.bf16.msra.mxu0 0
          %1876 = vmatprep.subr.bf16.mxu0 0
          %1877 = vmatpush1.bf16.msra.mxu0 0
          %1878 = vmatprep.subr.bf16.mxu0 0
          %1879 = vmatpush1.bf16.msra.mxu0 0
          %1880 = vmatprep.subr.bf16.mxu0 0
          %1881 = vmatpush1.bf16.msra.mxu0 0
          %1882 = vmatprep.subr.bf16.mxu0 0
          %1883 = vmatpush1.bf16.msra.mxu0 0
          %1884 = vmatprep.subr.bf16.mxu0 0
          %1885 = vmatpush1.bf16.msra.mxu0 0
          %1886 = vmatprep.subr.bf16.mxu0 0
          %1887 = vmatpush1.bf16.msra.mxu0 0
          %1888 = vmatprep.subr.bf16.mxu0 0
          %1889 = vmatpush1.bf16.msra.mxu0 0
          %1890 = vmatprep.subr.bf16.mxu0 0
          %1891 = vmatpush1.bf16.msra.mxu0 0
          %1892 = vmatprep.subr.bf16.mxu0 0
          %1893 = vmatpush1.bf16.msra.mxu0 0
          %1894 = vmatprep.subr.bf16.mxu0 0
          %1895 = vmatpush1.bf16.msra.mxu0 0
          %1896 = vmatprep.mubr.bf16.mxu0 0
          %1897 = vmatmul.mubr.bf16.gmra.mrb[0].mxu0 %v1862
          %v1898 = vpop.f32.mrb[0].mxu0
          %v1899 = vadd.f32 %v1847, %v1898
          %v1900 = vpop.f32.mrb[0].mxu0
          %v1901 = vpop.f32.mrb[0].mxu0
          %v1902 = vpop.f32.mrb[0].mxu0
          %1903 = vdwg.mxu0
          %1904 = vst [vmem:[#allocation3] sm:$0x3] %v1899
        $region108: #{bert_multilabel_forward.1} parent=99 // pred_fallthru
          _
        // Predicated region
        $region109: #{bert_multilabel_forward.1} parent=99 // pred_check
          %p1905 = pneg %p525
        $region110: #{bert_multilabel_forward.1} parent=99 // pred_check_branch
          %1907 = sbr.rel (%p1905) target = $region112
        $region111: #{bert_multilabel_forward.1} parent=99 // pred_region
          %s1909 = ssub.s32 32, 32
          %1910 = vsyncadd [#allocation4], %s1909
          %s1912 = sshll.u32 [#allocation3], 4
          %s1913 = int_to_ptr.vmem [resolvable:$true] %s1912
          %1915 = dma.vmem_to_hbm [thread:$0]  %s1913, 32, %s20, [#allocation4]
        $region112: #{bert_multilabel_forward.1} parent=99 // pred_fallthru
          _
        // Predicated region
        $region113: #{bert_multilabel_forward.1} parent=99 // pred_check
          %p1916 = pneg %p525
        $region114: #{bert_multilabel_forward.1} parent=99 // pred_check_branch
          %1918 = sbr.rel (%p1916) target = $region116
        $region115: #{bert_multilabel_forward.1} parent=99 // pred_region
          %1919 = dma.done [#allocation4], 32
        $region116: #{bert_multilabel_forward.1} parent=99 // pred_fallthru
          _
      $region100: #{bert_multilabel_forward.1} parent=5 // pred_fallthru
        _
      %p1920 = scmp.le.s32.totalorder 2, %s27
      // Predicated region
      $region117: #{bert_multilabel_forward.1} parent=5 // pred_check
        %p1921 = pneg %p1920
      $region118: #{bert_multilabel_forward.1} parent=5 // pred_check_branch
        %1923 = sbr.rel (%p1921) target = $region120
      $region119: #{bert_multilabel_forward.1} parent=5 // pred_region
        %s1924 = ssub.s32 %s27, 2
      $region120: #{bert_multilabel_forward.1} parent=5 // pred_fallthru
        _
    $region6: #{bert_multilabel_forward.1} parent=1 // loop_footer
      %s31 = sadd.s32 1, %s27
    $region7: #{bert_multilabel_forward.1} parent=1 // loop_footer_branch
      %26 = sbr.rel target = $region3
    $region8: #{bert_multilabel_forward.1} parent=1 // loop_exit
      _
    %1925 = vsyncpa [#allocation4], 1
    %s1926 = scalar_lea.sflag [#allocation4], 1
    %1927 = vsyncpa %s1926, 1

</llo_original>
